<compile_context>
chip_gen: v7x
topology: tpu7x:2x2x1
jax: 0.10.0
libtpu: 0.0.40
codegen_flags: <defaults>
</compile_context>

<pallas_src>
import functools

import jax
import jax.numpy as jnp
from jax import lax
from jax.experimental import pallas as pl
from jax.experimental.pallas import tpu as pltpu

PATCH = 14
LN_EPS = 1e-6


# ----------------------------- tile selection -----------------------------

def _round_up(x, m):
    return ((x + m - 1) // m) * m


def _pick_m_tile(M):
    """Large MXU-friendly row tiles; ragged last block handled by a cdiv grid."""
    if M <= 128:
        return _round_up(M, 8)
    best_tm, best_pad = None, None
    for c in (512, 256, 128):
        pad = _round_up(M, c)
        if best_pad is None or pad < best_pad:
            best_tm, best_pad = c, pad
    return best_tm


def _pick_exact_tile(d):
    """Exact-divisor tile for K / N (K must tile exactly; real DINOv2 widths are
    multiples of 128, full-extent fallback covers the small test shapes)."""
    for c in (512, 256, 128):
        if d % c == 0:
            return c
    return d


# ----------------------------- Pallas kernels -----------------------------

def _mm_kernel(x_ref, w_ref, b_ref, o_ref, acc_ref, *, activation):
    # out = act(x @ w + b), K-tiled reduction with f32 VMEM accumulator.
    @pl.when(pl.program_id(2) == 0)
    def _():
        acc_ref[...] = jnp.zeros_like(acc_ref)

    acc_ref[...] += jnp.dot(
        x_ref[...].astype(jnp.bfloat16),
        w_ref[...].astype(jnp.bfloat16),
        preferred_element_type=jnp.float32,
    )

    @pl.when(pl.program_id(2) == pl.num_programs(2) - 1)
    def _():
        acc = acc_ref[...] + b_ref[...].astype(jnp.float32)
        if activation == "gelu":
            # TODO(synk): PyTorch nn.GELU default is exact erf GELU; tanh approx used here.
            acc = jax.nn.gelu(acc, approximate=True)
        o_ref[...] = acc.astype(o_ref.dtype)


def _mm_res_ls_kernel(x_ref, w_ref, b_ref, res_ref, g_ref, o_ref, acc_ref):
    # out = res + LayerScale(x @ w + b)   (drop_path is identity at eval time)
    @pl.when(pl.program_id(2) == 0)
    def _():
        acc_ref[...] = jnp.zeros_like(acc_ref)

    acc_ref[...] += jnp.dot(
        x_ref[...].astype(jnp.bfloat16),
        w_ref[...].astype(jnp.bfloat16),
        preferred_element_type=jnp.float32,
    )

    @pl.when(pl.program_id(2) == pl.num_programs(2) - 1)
    def _():
        y = (acc_ref[...] + b_ref[...].astype(jnp.float32)) * g_ref[...].astype(jnp.float32)
        o_ref[...] = (res_ref[...].astype(jnp.float32) + y).astype(o_ref.dtype)


def _ln_mm_kernel(x_ref, g_ref, bln_ref, w_ref, b_ref, o_ref, xn_ref, *, eps, activation):
    # out = act(LayerNorm(x) @ w + b), full-K row blocks. LayerNorm is computed once
    # per row tile (at j == 0) into a bf16 VMEM scratch and reused for every N tile.
    @pl.when(pl.program_id(1) == 0)
    def _():
        x = x_ref[...].astype(jnp.float32)
        mean = jnp.mean(x, axis=-1, keepdims=True)
        xc = x - mean
        var = jnp.mean(xc * xc, axis=-1, keepdims=True)
        xn = xc * lax.rsqrt(var + eps)
        xn = xn * g_ref[...] + bln_ref[...]
        xn_ref[...] = xn.astype(xn_ref.dtype)

    acc = jnp.dot(
        xn_ref[...],
        w_ref[...].astype(jnp.bfloat16),
        preferred_element_type=jnp.float32,
    )
    acc = acc + b_ref[...].astype(jnp.float32)
    if activation == "gelu":
        # TODO(synk): PyTorch nn.GELU default is exact erf GELU; tanh approx used here.
        acc = jax.nn.gelu(acc, approximate=True)
    o_ref[...] = acc.astype(o_ref.dtype)


def _attn_kernel(q_ref, k_ref, v_ref, o_ref, *, scale):
    # One (batch, head) pair per grid step; blocks are (1, 1, L, dh).
    # TODO(synk): for large L (518px -> L=1370) switch to a flash-style online-softmax
    # kernel with a KV grid axis so the LxL score matrix never materialises in VMEM.
    q = (q_ref[0, 0].astype(jnp.float32) * scale).astype(jnp.bfloat16)  # scale folded into q
    k = k_ref[0, 0]
    v = v_ref[0, 0]
    s = lax.dot_general(q, k, (((1,), (1,)), ((), ())),
                        preferred_element_type=jnp.float32)             # [L, L], no k.T
    s = s - jnp.max(s, axis=-1, keepdims=True)
    p = jnp.exp(s)
    p = p * (1.0 / jnp.sum(p, axis=-1, keepdims=True))
    o = jnp.dot(p.astype(jnp.bfloat16), v, preferred_element_type=jnp.float32)
    o_ref[0, 0] = o.astype(o_ref.dtype)


# ----------------------------- kernel wrappers -----------------------------

def matmul_bias(x, w, b, activation=None, out_dtype=None):
    M, K = x.shape
    K2, N = w.shape
    assert K == K2
    out_dtype = out_dtype if out_dtype is not None else x.dtype
    tm, tn, tk = _pick_m_tile(M), _pick_exact_tile(N), _pick_exact_tile(K)
    assert K % tk == 0 and N % tn == 0
    grid = (pl.cdiv(M, tm), N // tn, K // tk)
    cost = pl.CostEstimate(
        flops=2 * M * N * K,
        transcendentals=(M * N if activation == "gelu" else 0),
        bytes_accessed=(x.size * x.dtype.itemsize + w.size * w.dtype.itemsize
                        + M * N * jnp.dtype(out_dtype).itemsize),
    )
    return pl.pallas_call(
        functools.partial(_mm_kernel, activation=activation),
        out_shape=jax.ShapeDtypeStruct((M, N), out_dtype),
        grid=grid,
        in_specs=[
            pl.BlockSpec((tm, tk), lambda i, j, k: (i, k)),
            pl.BlockSpec((tk, tn), lambda i, j, k: (k, j)),
            pl.BlockSpec((1, tn), lambda i, j, k: (0, j)),
        ],
        out_specs=pl.BlockSpec((tm, tn), lambda i, j, k: (i, j)),
        scratch_shapes=[pltpu.VMEM((tm, tn), jnp.float32)],
        compiler_params=pltpu.CompilerParams(
            dimension_semantics=("parallel", "parallel", "arbitrary")),
        cost_estimate=cost,
    )(x, w, b.reshape(1, N))


def matmul_bias_residual_ls(x, w, b, res, gamma):
    M, K = x.shape
    K2, N = w.shape
    assert K == K2 and res.shape == (M, N)
    tm, tn, tk = _pick_m_tile(M), _pick_exact_tile(N), _pick_exact_tile(K)
    assert K % tk == 0 and N % tn == 0
    grid = (pl.cdiv(M, tm), N // tn, K // tk)
    cost = pl.CostEstimate(
        flops=2 * M * N * K,
        transcendentals=0,
        bytes_accessed=(x.size * x.dtype.itemsize + w.size * w.dtype.itemsize
                        + 2 * M * N * res.dtype.itemsize),
    )
    return pl.pallas_call(
        _mm_res_ls_kernel,
        out_shape=jax.ShapeDtypeStruct((M, N), res.dtype),
        grid=grid,
        in_specs=[
            pl.BlockSpec((tm, tk), lambda i, j, k: (i, k)),
            pl.BlockSpec((tk, tn), lambda i, j, k: (k, j)),
            pl.BlockSpec((1, tn), lambda i, j, k: (0, j)),
            pl.BlockSpec((tm, tn), lambda i, j, k: (i, j)),
            pl.BlockSpec((1, tn), lambda i, j, k: (0, j)),
        ],
        out_specs=pl.BlockSpec((tm, tn), lambda i, j, k: (i, j)),
        scratch_shapes=[pltpu.VMEM((tm, tn), jnp.float32)],
        compiler_params=pltpu.CompilerParams(
            dimension_semantics=("parallel", "parallel", "arbitrary")),
        cost_estimate=cost,
    )(x, w, b.reshape(1, N), res, gamma.reshape(1, N))


def ln_matmul_bias(x, ln_g, ln_b, w, b, activation=None, out_dtype=None, eps=LN_EPS):
    """Fused LayerNorm -> Linear(-> GELU). Uses full-K row blocks so the kernel sees
    whole rows; LN result cached in a bf16 VMEM scratch and reused across N tiles."""
    M, K = x.shape
    K2, N = w.shape
    assert K == K2
    out_dtype = out_dtype if out_dtype is not None else x.dtype
    tm, tn = _pick_m_tile(M), _pick_exact_tile(N)
    assert N % tn == 0
    grid = (pl.cdiv(M, tm), N // tn)
    cost = pl.CostEstimate(
        flops=2 * M * N * K + 8 * M * K,
        transcendentals=(M * N if activation == "gelu" else 0),
        bytes_accessed=(x.size * x.dtype.itemsize + w.size * w.dtype.itemsize
                        + M * N * jnp.dtype(out_dtype).itemsize),
    )
    return pl.pallas_call(
        functools.partial(_ln_mm_kernel, eps=eps, activation=activation),
        out_shape=jax.ShapeDtypeStruct((M, N), out_dtype),
        grid=grid,
        in_specs=[
            pl.BlockSpec((tm, K), lambda i, j: (i, 0)),
            pl.BlockSpec((1, K), lambda i, j: (0, 0)),
            pl.BlockSpec((1, K), lambda i, j: (0, 0)),
            pl.BlockSpec((K, tn), lambda i, j: (0, j)),
            pl.BlockSpec((1, tn), lambda i, j: (0, j)),
        ],
        out_specs=pl.BlockSpec((tm, tn), lambda i, j: (i, j)),
        scratch_shapes=[pltpu.VMEM((tm, K), jnp.bfloat16)],
        compiler_params=pltpu.CompilerParams(
            dimension_semantics=("parallel", "arbitrary")),
        cost_estimate=cost,
    )(x, ln_g.reshape(1, K), ln_b.reshape(1, K), w, b.reshape(1, N))


def attention(qkv, B, L, num_heads):
    # qkv: [B*L, 3D] (bias already added) -> out: [B*L, D]
    D3 = qkv.shape[-1]
    D = D3 // 3
    dh = D // num_heads
    scale = float(dh) ** -0.5
    qkv = qkv.reshape(B, L, 3, num_heads, dh).transpose(2, 0, 3, 1, 4)  # [3, B, H, L, dh]
    q, k, v = qkv[0], qkv[1], qkv[2]
    spec = pl.BlockSpec((1, 1, L, dh), lambda b, h: (b, h, 0, 0))
    out = pl.pallas_call(
        functools.partial(_attn_kernel, scale=scale),
        out_shape=jax.ShapeDtypeStruct((B, num_heads, L, dh), qkv.dtype),
        grid=(B, num_heads),
        in_specs=[spec, spec, spec],
        out_specs=spec,
        compiler_params=pltpu.CompilerParams(
            dimension_semantics=("parallel", "parallel")),
    )(q, k, v)
    return out.transpose(0, 2, 1, 3).reshape(B * L, D)


# ----------------------------- model wrapper -----------------------------

def transformer_block(x2, p, B, L, num_heads):
    # x2: bf16 residual stream [B*L, D]
    qkv = ln_matmul_bias(x2, p["norm1_g"], p["norm1_b"], p["qkv_w"], p["qkv_b"],
                         out_dtype=jnp.bfloat16)                       # [B*L, 3D]
    o = attention(qkv, B, L, num_heads)                                # [B*L, D]
    x2 = matmul_bias_residual_ls(o, p["proj_w"], p["proj_b"], x2, p["ls1_g"])

    h = ln_matmul_bias(x2, p["norm2_g"], p["norm2_b"], p["fc1_w"], p["fc1_b"],
                       activation="gelu", out_dtype=jnp.bfloat16)      # [B*L, 4D]
    x2 = matmul_bias_residual_ls(h, p["fc2_w"], p["fc2_b"], x2, p["ls2_g"])
    return x2


def dinov2_forward(x_img, params, num_heads):
    B, C, H, W = x_img.shape
    Hp, Wp = H // PATCH, W // PATCH
    N = Hp * Wp
    D = params["patch_w"].shape[1]
    Kp = C * PATCH * PATCH
    K_pad = params["patch_w"].shape[0]   # pre-padded at init to a multiple of 128

    # patch_embed: 14x14 stride-14 conv == per-patch linear (glue reshape + tiled matmul)
    patches = x_img.reshape(B, C, Hp, PATCH, Wp, PATCH)
    patches = patches.transpose(0, 2, 4, 1, 3, 5).reshape(B * N, Kp)
    if K_pad != Kp:
        patches = jnp.pad(patches, ((0, 0), (0, K_pad - Kp)))
    tok = matmul_bias(patches, params["patch_w"], params["patch_b"],
                      out_dtype=jnp.bfloat16).reshape(B, N, D)

    # prepare_tokens_with_masks: prepend cls token, add positional embedding.
    # TODO(synk): no pos_embed interpolation; input resolution must match pos_embed length.
    assert params["pos_embed"].shape[1] == N + 1
    cls = jnp.broadcast_to(params["cls_token"], (B, 1, D)).astype(jnp.bfloat16)
    x = jnp.concatenate([cls, tok], axis=1) + params["pos_embed"].astype(jnp.bfloat16)
    L = N + 1

    x2 = x.reshape(B * L, D)
    for blk in params["blocks"]:
        x2 = transformer_block(x2, blk, B, L, num_heads)
    x = x2.reshape(B, L, D)

    # defaults: norm_layer=False, return_token=False
    f = x[:, 1:].reshape(B, Hp, Wp, D).transpose(0, 3, 1, 2).astype(jnp.float32)
    return f                                                            # [B, D, Hp, Wp]


def init_params(key, *, embed_dim, depth, num_patches, in_chans=3, mlp_ratio=4):
    D = embed_dim
    hid = mlp_ratio * D
    P = in_chans * PATCH * PATCH
    P_pad = _round_up(P, 128)            # pre-pad patch-embed K once, at init
    keys = jax.random.split(key, 4 + depth)

    def nrm(k, shape, scale=0.02, dtype=jnp.float32):
        return (scale * jax.random.normal(k, shape)).astype(dtype)

    bf = jnp.bfloat16  # matmul weights kept in bf16 (MXU fast path, half the HBM traffic)
    patch_w = nrm(keys[0], (P, D), dtype=bf)
    patch_w = jnp.pad(patch_w, ((0, P_pad - P), (0, 0)))
    params = {
        "patch_w": patch_w,
        "patch_b": jnp.zeros((D,), jnp.float32),
        "cls_token": nrm(keys[1], (1, 1, D)),
        "pos_embed": nrm(keys[2], (1, 1 + num_patches, D)),
        "blocks": [],
    }
    for i in range(depth):
        bk = jax.random.split(keys[4 + i], 4)
        params["blocks"].append({
            "norm1_g": jnp.ones((D,), jnp.float32),
            "norm1_b": jnp.zeros((D,), jnp.float32),
            "qkv_w": nrm(bk[0], (D, 3 * D), dtype=bf),
            "qkv_b": jnp.zeros((3 * D,), jnp.float32),
            "proj_w": nrm(bk[1], (D, D), dtype=bf),
            "proj_b": jnp.zeros((D,), jnp.float32),
            "ls1_g": jnp.full((D,), 1e-5, jnp.float32),
            "norm2_g": jnp.ones((D,), jnp.float32),
            "norm2_b": jnp.zeros((D,), jnp.float32),
            "fc1_w": nrm(bk[2], (D, hid), dtype=bf),
            "fc1_b": jnp.zeros((hid,), jnp.float32),
            "fc2_w": nrm(bk[3], (hid, D), dtype=bf),
            "fc2_b": jnp.zeros((D,), jnp.float32),
            "ls2_g": jnp.full((D,), 1e-5, jnp.float32),
        })
    return params


if __name__ == "__main__":
    # small, module-consistent shapes: B=2, C=3, H=W=28 (divisible by 14) -> 2x2 patches
    B, C, H, W = 2, 3, 28, 28
    embed_dim, depth, num_heads = 32, 2, 2
    Hp, Wp = H // PATCH, W // PATCH
    num_patches = Hp * Wp

    key = jax.random.PRNGKey(0)
    k_in, k_par = jax.random.split(key)
    x = jax.random.normal(k_in, (B, C, H, W), dtype=jnp.float32)
    params = init_params(k_par, embed_dim=embed_dim, depth=depth, num_patches=num_patches)

    fwd = jax.jit(dinov2_forward, static_argnums=(2,))
    f = fwd(x, params, num_heads)
    f = jax.block_until_ready(f)
    assert f.shape == (B, embed_dim, Hp, Wp), f.shape
    assert bool(jnp.all(jnp.isfinite(f)))
    print("KERNEL_OK")
</pallas_src>

<mosaic_0001>
module attributes {stable_mosaic.version = 11 : i64} {
  func.func @_mm_kernel(%arg0: i32, %arg1: i32, %arg2: i32, %arg3: memref<8x128xf32, #tpu.memory_space<vmem>>, %arg4: memref<128x32xbf16, #tpu.memory_space<vmem>>, %arg5: memref<1x32xf32, #tpu.memory_space<vmem>>, %arg6: memref<8x32xbf16, #tpu.memory_space<vmem>>, %arg7: memref<8x32xf32, #tpu.memory_space<vmem>>) attributes {dimension_semantics = [#tpu.dimension_semantics<parallel>, #tpu.dimension_semantics<parallel>, #tpu.dimension_semantics<arbitrary>], iteration_bounds = array<i64: 1, 1, 5>, scalar_prefetch = 0 : i64, scratch_operands = 1 : i64, tpu.core_type = #tpu.core_type<tc>, window_params = [{transform_indices = @transform_0, window_bounds = array<i64: 8, 128>}, {transform_indices = @transform_1, window_bounds = array<i64: 128, 32>}, {transform_indices = @transform_2, window_bounds = array<i64: 1, 32>}, {transform_indices = @transform_3, window_bounds = array<i64: 8, 32>}]} {
    %c0_i32 = arith.constant 0 : i32
    %0 = arith.cmpi eq, %arg2, %c0_i32 : i32
    %1 = arith.extui %0 : i1 to i32
    %c0_i32_0 = arith.constant 0 : i32
    %2 = arith.cmpi ne, %1, %c0_i32_0 : i32
    scf.if %2 {
      %cst_9 = arith.constant 0.000000e+00 : f32
      %13 = vector.broadcast %cst_9 : f32 to vector<8x32xf32>
      %c0_10 = arith.constant 0 : index
      %c0_11 = arith.constant 0 : index
      %14 = vector.load %arg7[%c0_10, %c0_11] : memref<8x32xf32, #tpu.memory_space<vmem>>, vector<8x32xf32>
      tpu.vector_store %arg7[%c0_10, %c0_11], %13 {strides = array<i32>} : memref<8x32xf32, #tpu.memory_space<vmem>>, vector<8x32xf32>,
    } else {
    }
    %c0 = arith.constant 0 : index
    %c0_1 = arith.constant 0 : index
    %3 = vector.load %arg7[%c0, %c0_1] : memref<8x32xf32, #tpu.memory_space<vmem>>, vector<8x32xf32>
    %c0_2 = arith.constant 0 : index
    %c0_3 = arith.constant 0 : index
    %4 = vector.load %arg3[%c0_2, %c0_3] : memref<8x128xf32, #tpu.memory_space<vmem>>, vector<8x128xf32>
    %5 = arith.truncf %4 : vector<8x128xf32> to vector<8x128xbf16>
    %c0_4 = arith.constant 0 : index
    %c0_5 = arith.constant 0 : index
    %6 = vector.load %arg4[%c0_4, %c0_5] : memref<128x32xbf16, #tpu.memory_space<vmem>>, vector<128x32xbf16>
    %cst = arith.constant dense<0.000000e+00> : vector<8x32xf32>
    %7 = tpu.matmul %5, %6, %cst {dimension_numbers = #tpu.dot_dimension_numbers<[1], [0], [0], [1], [0, 0, 1, 1], [], []>} : vector<8x128xbf16>, vector<128x32xbf16>, vector<8x32xf32> -> vector<8x32xf32>
    %8 = arith.addf %3, %7 : vector<8x32xf32>
    %c0_6 = arith.constant 0 : index
    %c0_7 = arith.constant 0 : index
    %9 = vector.load %arg7[%c0_6, %c0_7] : memref<8x32xf32, #tpu.memory_space<vmem>>, vector<8x32xf32>
    tpu.vector_store %arg7[%c0_6, %c0_7], %8 {strides = array<i32>} : memref<8x32xf32, #tpu.memory_space<vmem>>, vector<8x32xf32>,
    %c4_i32 = arith.constant 4 : i32
    %10 = arith.cmpi eq, %arg2, %c4_i32 : i32
    %11 = arith.extui %10 : i1 to i32
    %c0_i32_8 = arith.constant 0 : i32
    %12 = arith.cmpi ne, %11, %c0_i32_8 : i32
    scf.if %12 {
      %c0_9 = arith.constant 0 : index
      %c0_10 = arith.constant 0 : index
      %13 = vector.load %arg7[%c0_9, %c0_10] : memref<8x32xf32, #tpu.memory_space<vmem>>, vector<8x32xf32>
      %c0_11 = arith.constant 0 : index
      %c0_12 = arith.constant 0 : index
      %14 = vector.load %arg5[%c0_11, %c0_12] : memref<1x32xf32, #tpu.memory_space<vmem>>, vector<1x32xf32>
      %15 = vector.broadcast %14 : vector<1x32xf32> to vector<8x32xf32>
      %16 = arith.addf %13, %15 : vector<8x32xf32>
      %17 = arith.truncf %16 : vector<8x32xf32> to vector<8x32xbf16>
      %c0_13 = arith.constant 0 : index
      %c0_14 = arith.constant 0 : index
      %18 = vector.load %arg6[%c0_13, %c0_14] : memref<8x32xbf16, #tpu.memory_space<vmem>>, vector<8x32xbf16>
      tpu.vector_store %arg6[%c0_13, %c0_14], %17 {strides = array<i32>} : memref<8x32xbf16, #tpu.memory_space<vmem>>, vector<8x32xbf16>,
    } else {
    }
    return
  }
  func.func @transform_0(%arg0: i32, %arg1: i32, %arg2: i32) -> (i32, i32) {
    %c0_i32 = arith.constant 0 : i32
    return %arg0, %arg2 : i32, i32
  }
  func.func @transform_1(%arg0: i32, %arg1: i32, %arg2: i32) -> (i32, i32) {
    %c0_i32 = arith.constant 0 : i32
    return %arg2, %arg1 : i32, i32
  }
  func.func @transform_2(%arg0: i32, %arg1: i32, %arg2: i32) -> (i32, i32) {
    %c0_i32 = arith.constant 0 : i32
    %c0_i32_0 = arith.constant 0 : i32
    return %c0_i32, %arg1 : i32, i32
  }
  func.func @transform_3(%arg0: i32, %arg1: i32, %arg2: i32) -> (i32, i32) {
    %c0_i32 = arith.constant 0 : i32
    return %arg0, %arg1 : i32, i32
  }
}

module attributes {stable_mosaic.version = 11 : i64} {
  func.func @_ln_mm_kernel(%arg0: i32, %arg1: i32, %arg2: memref<16x32xbf16, #tpu.memory_space<vmem>>, %arg3: memref<1x32xf32, #tpu.memory_space<vmem>>, %arg4: memref<1x32xf32, #tpu.memory_space<vmem>>, %arg5: memref<32x96xbf16, #tpu.memory_space<vmem>>, %arg6: memref<1x96xf32, #tpu.memory_space<vmem>>, %arg7: memref<16x96xbf16, #tpu.memory_space<vmem>>, %arg8: memref<16x32xbf16, #tpu.memory_space<vmem>>) attributes {dimension_semantics = [#tpu.dimension_semantics<parallel>, #tpu.dimension_semantics<arbitrary>], iteration_bounds = array<i64: 1, 1>, scalar_prefetch = 0 : i64, scratch_operands = 1 : i64, tpu.core_type = #tpu.core_type<tc>, window_params = [{transform_indices = @transform_0, window_bounds = array<i64: 16, 32>}, {pipeline_mode = #tpu.pipeline_mode<synchronous>, transform_indices = @transform_1, window_bounds = array<i64: 1, 32>}, {pipeline_mode = #tpu.pipeline_mode<synchronous>, transform_indices = @transform_2, window_bounds = array<i64: 1, 32>}, {transform_indices = @transform_3, window_bounds = array<i64: 32, 96>}, {transform_indices = @transform_4, window_bounds = array<i64: 1, 96>}, {transform_indices = @transform_5, window_bounds = array<i64: 16, 96>}]} {
    %c0_i32 = arith.constant 0 : i32
    %0 = arith.cmpi eq, %arg1, %c0_i32 : i32
    %1 = arith.extui %0 : i1 to i32
    %c0_i32_0 = arith.constant 0 : i32
    %2 = arith.cmpi ne, %1, %c0_i32_0 : i32
    scf.if %2 {
      %c0_8 = arith.constant 0 : index
      %c0_9 = arith.constant 0 : index
      %11 = vector.load %arg2[%c0_8, %c0_9] : memref<16x32xbf16, #tpu.memory_space<vmem>>, vector<16x32xbf16>
      %12 = arith.extf %11 : vector<16x32xbf16> to vector<16x32xf32>
      %cst_10 = arith.constant dense<0.000000e+00> : vector<16xf32>
      %13 = vector.multi_reduction <add>, %12, %cst_10 [1] : vector<16x32xf32> to vector<16xf32>
      %14 = vector.shape_cast %13 : vector<16xf32> to vector<16x1xf32>
      %cst_11 = arith.constant 3.200000e+01 : f32
      %15 = vector.broadcast %cst_11 : f32 to vector<16x1xf32>
      %16 = arith.divf %14, %15 : vector<16x1xf32>
      %17 = vector.broadcast %16 : vector<16x1xf32> to vector<16x32xf32>
      %18 = arith.subf %12, %17 : vector<16x32xf32>
      %19 = arith.mulf %18, %18 : vector<16x32xf32>
      %cst_12 = arith.constant dense<0.000000e+00> : vector<16xf32>
      %20 = vector.multi_reduction <add>, %19, %cst_12 [1] : vector<16x32xf32> to vector<16xf32>
      %21 = vector.shape_cast %20 : vector<16xf32> to vector<16x1xf32>
      %cst_13 = arith.constant 3.200000e+01 : f32
      %22 = vector.broadcast %cst_13 : f32 to vector<16x1xf32>
      %23 = arith.divf %21, %22 : vector<16x1xf32>
      %cst_14 = arith.constant 9.99999997E-7 : f32
      %24 = vector.broadcast %cst_14 : f32 to vector<16x1xf32>
      %25 = arith.addf %23, %24 : vector<16x1xf32>
      %26 = math.rsqrt %25 : vector<16x1xf32>
      %27 = vector.broadcast %26 : vector<16x1xf32> to vector<16x32xf32>
      %28 = arith.mulf %18, %27 : vector<16x32xf32>
      %c0_15 = arith.constant 0 : index
      %c0_16 = arith.constant 0 : index
      %29 = vector.load %arg3[%c0_15, %c0_16] : memref<1x32xf32, #tpu.memory_space<vmem>>, vector<1x32xf32>
      %30 = vector.broadcast %29 : vector<1x32xf32> to vector<16x32xf32>
      %31 = arith.mulf %28, %30 : vector<16x32xf32>
      %c0_17 = arith.constant 0 : index
      %c0_18 = arith.constant 0 : index
      %32 = vector.load %arg4[%c0_17, %c0_18] : memref<1x32xf32, #tpu.memory_space<vmem>>, vector<1x32xf32>
      %33 = vector.broadcast %32 : vector<1x32xf32> to vector<16x32xf32>
      %34 = arith.addf %31, %33 : vector<16x32xf32>
      %35 = arith.truncf %34 : vector<16x32xf32> to vector<16x32xbf16>
      %c0_19 = arith.constant 0 : index
      %c0_20 = arith.constant 0 : index
      %36 = vector.load %arg8[%c0_19, %c0_20] : memref<16x32xbf16, #tpu.memory_space<vmem>>, vector<16x32xbf16>
      tpu.vector_store %arg8[%c0_19, %c0_20], %35 {strides = array<i32>} : memref<16x32xbf16, #tpu.memory_space<vmem>>, vector<16x32xbf16>,
    } else {
    }
    %c0 = arith.constant 0 : index
    %c0_1 = arith.constant 0 : index
    %3 = vector.load %arg8[%c0, %c0_1] : memref<16x32xbf16, #tpu.memory_space<vmem>>, vector<16x32xbf16>
    %c0_2 = arith.constant 0 : index
    %c0_3 = arith.constant 0 : index
    %4 = vector.load %arg5[%c0_2, %c0_3] : memref<32x96xbf16, #tpu.memory_space<vmem>>, vector<32x96xbf16>
    %cst = arith.constant dense<0.000000e+00> : vector<16x96xf32>
    %5 = tpu.matmul %3, %4, %cst {dimension_numbers = #tpu.dot_dimension_numbers<[1], [0], [0], [1], [0, 0, 1, 1], [], []>} : vector<16x32xbf16>, vector<32x96xbf16>, vector<16x96xf32> -> vector<16x96xf32>
    %c0_4 = arith.constant 0 : index
    %c0_5 = arith.constant 0 : index
    %6 = vector.load %arg6[%c0_4, %c0_5] : memref<1x96xf32, #tpu.memory_space<vmem>>, vector<1x96xf32>
    %7 = vector.broadcast %6 : vector<1x96xf32> to vector<16x96xf32>
    %8 = arith.addf %5, %7 : vector<16x96xf32>
    %9 = arith.truncf %8 : vector<16x96xf32> to vector<16x96xbf16>
    %c0_6 = arith.constant 0 : index
    %c0_7 = arith.constant 0 : index
    %10 = vector.load %arg7[%c0_6, %c0_7] : memref<16x96xbf16, #tpu.memory_space<vmem>>, vector<16x96xbf16>
    tpu.vector_store %arg7[%c0_6, %c0_7], %9 {strides = array<i32>} : memref<16x96xbf16, #tpu.memory_space<vmem>>, vector<16x96xbf16>,
    return
  }
  func.func @transform_0(%arg0: i32, %arg1: i32) -> (i32, i32) {
    %c0_i32 = arith.constant 0 : i32
    %c0_i32_0 = arith.constant 0 : i32
    return %arg0, %c0_i32 : i32, i32
  }
  func.func @transform_1(%arg0: i32, %arg1: i32) -> (i32, i32) {
    %c0_i32 = arith.constant 0 : i32
    %c0_i32_0 = arith.constant 0 : i32
    %c0_i32_1 = arith.constant 0 : i32
    return %c0_i32, %c0_i32_0 : i32, i32
  }
  func.func @transform_2(%arg0: i32, %arg1: i32) -> (i32, i32) {
    %c0_i32 = arith.constant 0 : i32
    %c0_i32_0 = arith.constant 0 : i32
    %c0_i32_1 = arith.constant 0 : i32
    return %c0_i32, %c0_i32_0 : i32, i32
  }
  func.func @transform_3(%arg0: i32, %arg1: i32) -> (i32, i32) {
    %c0_i32 = arith.constant 0 : i32
    %c0_i32_0 = arith.constant 0 : i32
    return %c0_i32, %arg1 : i32, i32
  }
  func.func @transform_4(%arg0: i32, %arg1: i32) -> (i32, i32) {
    %c0_i32 = arith.constant 0 : i32
    %c0_i32_0 = arith.constant 0 : i32
    return %c0_i32, %arg1 : i32, i32
  }
  func.func @transform_5(%arg0: i32, %arg1: i32) -> (i32, i32) {
    %c0_i32 = arith.constant 0 : i32
    return %arg0, %arg1 : i32, i32
  }
}

module attributes {stable_mosaic.version = 11 : i64} {
  func.func @_attn_kernel(%arg0: i32, %arg1: i32, %arg2: memref<1x1x5x16xbf16, #tpu.memory_space<vmem>>, %arg3: memref<1x1x5x16xbf16, #tpu.memory_space<vmem>>, %arg4: memref<1x1x5x16xbf16, #tpu.memory_space<vmem>>, %arg5: memref<1x1x5x16xbf16, #tpu.memory_space<vmem>>) attributes {dimension_semantics = [#tpu.dimension_semantics<parallel>, #tpu.dimension_semantics<parallel>], iteration_bounds = array<i64: 2, 2>, scalar_prefetch = 0 : i64, scratch_operands = 0 : i64, tpu.core_type = #tpu.core_type<tc>, window_params = [{transform_indices = @transform_0, window_bounds = array<i64: 1, 1, 5, 16>}, {transform_indices = @transform_1, window_bounds = array<i64: 1, 1, 5, 16>}, {transform_indices = @transform_2, window_bounds = array<i64: 1, 1, 5, 16>}, {transform_indices = @transform_3, window_bounds = array<i64: 1, 1, 5, 16>}]} {
    %c0 = arith.constant 0 : index
    %c0_0 = arith.constant 0 : index
    %c0_1 = arith.constant 0 : index
    %c0_2 = arith.constant 0 : index
    %0 = vector.load %arg2[%c0, %c0_0, %c0_1, %c0_2] : memref<1x1x5x16xbf16, #tpu.memory_space<vmem>>, vector<1x1x5x16xbf16>
    %1 = vector.shape_cast %0 : vector<1x1x5x16xbf16> to vector<5x16xbf16>
    %2 = arith.extf %1 : vector<5x16xbf16> to vector<5x16xf32>
    %cst = arith.constant 2.500000e-01 : f32
    %3 = vector.broadcast %cst : f32 to vector<5x16xf32>
    %4 = arith.mulf %2, %3 : vector<5x16xf32>
    %5 = arith.truncf %4 : vector<5x16xf32> to vector<5x16xbf16>
    %c0_3 = arith.constant 0 : index
    %c0_4 = arith.constant 0 : index
    %c0_5 = arith.constant 0 : index
    %c0_6 = arith.constant 0 : index
    %6 = vector.load %arg3[%c0_3, %c0_4, %c0_5, %c0_6] : memref<1x1x5x16xbf16, #tpu.memory_space<vmem>>, vector<1x1x5x16xbf16>
    %7 = vector.shape_cast %6 : vector<1x1x5x16xbf16> to vector<5x16xbf16>
    %c0_7 = arith.constant 0 : index
    %c0_8 = arith.constant 0 : index
    %c0_9 = arith.constant 0 : index
    %c0_10 = arith.constant 0 : index
    %8 = vector.load %arg4[%c0_7, %c0_8, %c0_9, %c0_10] : memref<1x1x5x16xbf16, #tpu.memory_space<vmem>>, vector<1x1x5x16xbf16>
    %9 = vector.shape_cast %8 : vector<1x1x5x16xbf16> to vector<5x16xbf16>
    %cst_11 = arith.constant dense<0.000000e+00> : vector<5x5xf32>
    %10 = tpu.matmul %5, %7, %cst_11 {dimension_numbers = #tpu.dot_dimension_numbers<[1], [1], [0], [0], [0, 0, 1, 0], [], []>} : vector<5x16xbf16>, vector<5x16xbf16>, vector<5x5xf32> -> vector<5x5xf32>
    %cst_12 = arith.constant dense<0xFF800000> : vector<5xf32>
    %11 = vector.multi_reduction <maximumf>, %10, %cst_12 [1] : vector<5x5xf32> to vector<5xf32>
    %12 = vector.shape_cast %11 : vector<5xf32> to vector<5x1xf32>
    %13 = vector.broadcast %12 : vector<5x1xf32> to vector<5x5xf32>
    %14 = arith.subf %10, %13 : vector<5x5xf32>
    %15 = math.exp %14 : vector<5x5xf32>
    %cst_13 = arith.constant dense<0.000000e+00> : vector<5xf32>
    %16 = vector.multi_reduction <add>, %15, %cst_13 [1] : vector<5x5xf32> to vector<5xf32>
    %17 = vector.shape_cast %16 : vector<5xf32> to vector<5x1xf32>
    %cst_14 = arith.constant 1.000000e+00 : f32
    %18 = vector.broadcast %cst_14 : f32 to vector<5x1xf32>
    %19 = arith.divf %18, %17 : vector<5x1xf32>
    %20 = vector.broadcast %19 : vector<5x1xf32> to vector<5x5xf32>
    %21 = arith.mulf %15, %20 : vector<5x5xf32>
    %22 = arith.truncf %21 : vector<5x5xf32> to vector<5x5xbf16>
    %cst_15 = arith.constant dense<0.000000e+00> : vector<5x16xf32>
    %23 = tpu.matmul %22, %9, %cst_15 {dimension_numbers = #tpu.dot_dimension_numbers<[1], [0], [0], [1], [0, 0, 1, 1], [], []>} : vector<5x5xbf16>, vector<5x16xbf16>, vector<5x16xf32> -> vector<5x16xf32>
    %24 = arith.truncf %23 : vector<5x16xf32> to vector<5x16xbf16>
    %c0_16 = arith.constant 0 : index
    %c0_17 = arith.constant 0 : index
    %c0_18 = arith.constant 0 : index
    %c0_19 = arith.constant 0 : index
    %25 = vector.load %arg5[%c0_16, %c0_17, %c0_18, %c0_19] : memref<1x1x5x16xbf16, #tpu.memory_space<vmem>>, vector<1x1x5x16xbf16>
    %26 = vector.shape_cast %25 : vector<1x1x5x16xbf16> to vector<5x16xbf16>
    %27 = vector.shape_cast %24 : vector<5x16xbf16> to vector<1x1x5x16xbf16>
    tpu.vector_store %arg5[%c0_16, %c0_17, %c0_18, %c0_19], %27 {strides = array<i32>} : memref<1x1x5x16xbf16, #tpu.memory_space<vmem>>, vector<1x1x5x16xbf16>,
    return
  }
  func.func @transform_0(%arg0: i32, %arg1: i32) -> (i32, i32, i32, i32) {
    %c0_i32 = arith.constant 0 : i32
    %c0_i32_0 = arith.constant 0 : i32
    %c0_i32_1 = arith.constant 0 : i32
    return %arg0, %arg1, %c0_i32, %c0_i32_0 : i32, i32, i32, i32
  }
  func.func @transform_1(%arg0: i32, %arg1: i32) -> (i32, i32, i32, i32) {
    %c0_i32 = arith.constant 0 : i32
    %c0_i32_0 = arith.constant 0 : i32
    %c0_i32_1 = arith.constant 0 : i32
    return %arg0, %arg1, %c0_i32, %c0_i32_0 : i32, i32, i32, i32
  }
  func.func @transform_2(%arg0: i32, %arg1: i32) -> (i32, i32, i32, i32) {
    %c0_i32 = arith.constant 0 : i32
    %c0_i32_0 = arith.constant 0 : i32
    %c0_i32_1 = arith.constant 0 : i32
    return %arg0, %arg1, %c0_i32, %c0_i32_0 : i32, i32, i32, i32
  }
  func.func @transform_3(%arg0: i32, %arg1: i32) -> (i32, i32, i32, i32) {
    %c0_i32 = arith.constant 0 : i32
    %c0_i32_0 = arith.constant 0 : i32
    %c0_i32_1 = arith.constant 0 : i32
    return %arg0, %arg1, %c0_i32, %c0_i32_0 : i32, i32, i32, i32
  }
}

module attributes {stable_mosaic.version = 11 : i64} {
  func.func @_mm_res_ls_kernel(%arg0: i32, %arg1: i32, %arg2: i32, %arg3: memref<16x32xbf16, #tpu.memory_space<vmem>>, %arg4: memref<32x32xbf16, #tpu.memory_space<vmem>>, %arg5: memref<1x32xf32, #tpu.memory_space<vmem>>, %arg6: memref<16x32xbf16, #tpu.memory_space<vmem>>, %arg7: memref<1x32xf32, #tpu.memory_space<vmem>>, %arg8: memref<16x32xbf16, #tpu.memory_space<vmem>>, %arg9: memref<16x32xf32, #tpu.memory_space<vmem>>) attributes {dimension_semantics = [#tpu.dimension_semantics<parallel>, #tpu.dimension_semantics<parallel>, #tpu.dimension_semantics<arbitrary>], iteration_bounds = array<i64: 1, 1, 1>, scalar_prefetch = 0 : i64, scratch_operands = 1 : i64, tpu.core_type = #tpu.core_type<tc>, window_params = [{transform_indices = @transform_0, window_bounds = array<i64: 16, 32>}, {transform_indices = @transform_1, window_bounds = array<i64: 32, 32>}, {transform_indices = @transform_2, window_bounds = array<i64: 1, 32>}, {transform_indices = @transform_3, window_bounds = array<i64: 16, 32>}, {transform_indices = @transform_4, window_bounds = array<i64: 1, 32>}, {transform_indices = @transform_5, window_bounds = array<i64: 16, 32>}]} {
    %c0_i32 = arith.constant 0 : i32
    %0 = arith.cmpi eq, %arg2, %c0_i32 : i32
    %1 = arith.extui %0 : i1 to i32
    %c0_i32_0 = arith.constant 0 : i32
    %2 = arith.cmpi ne, %1, %c0_i32_0 : i32
    scf.if %2 {
      %cst_10 = arith.constant 0.000000e+00 : f32
      %12 = vector.broadcast %cst_10 : f32 to vector<16x32xf32>
      %c0_11 = arith.constant 0 : index
      %c0_12 = arith.constant 0 : index
      %13 = vector.load %arg9[%c0_11, %c0_12] : memref<16x32xf32, #tpu.memory_space<vmem>>, vector<16x32xf32>
      tpu.vector_store %arg9[%c0_11, %c0_12], %12 {strides = array<i32>} : memref<16x32xf32, #tpu.memory_space<vmem>>, vector<16x32xf32>,
    } else {
    }
    %c0 = arith.constant 0 : index
    %c0_1 = arith.constant 0 : index
    %3 = vector.load %arg9[%c0, %c0_1] : memref<16x32xf32, #tpu.memory_space<vmem>>, vector<16x32xf32>
    %c0_2 = arith.constant 0 : index
    %c0_3 = arith.constant 0 : index
    %4 = vector.load %arg3[%c0_2, %c0_3] : memref<16x32xbf16, #tpu.memory_space<vmem>>, vector<16x32xbf16>
    %c0_4 = arith.constant 0 : index
    %c0_5 = arith.constant 0 : index
    %5 = vector.load %arg4[%c0_4, %c0_5] : memref<32x32xbf16, #tpu.memory_space<vmem>>, vector<32x32xbf16>
    %cst = arith.constant dense<0.000000e+00> : vector<16x32xf32>
    %6 = tpu.matmul %4, %5, %cst {dimension_numbers = #tpu.dot_dimension_numbers<[1], [0], [0], [1], [0, 0, 1, 1], [], []>} : vector<16x32xbf16>, vector<32x32xbf16>, vector<16x32xf32> -> vector<16x32xf32>
    %7 = arith.addf %3, %6 : vector<16x32xf32>
    %c0_6 = arith.constant 0 : index
    %c0_7 = arith.constant 0 : index
    %8 = vector.load %arg9[%c0_6, %c0_7] : memref<16x32xf32, #tpu.memory_space<vmem>>, vector<16x32xf32>
    tpu.vector_store %arg9[%c0_6, %c0_7], %7 {strides = array<i32>} : memref<16x32xf32, #tpu.memory_space<vmem>>, vector<16x32xf32>,
    %c0_i32_8 = arith.constant 0 : i32
    %9 = arith.cmpi eq, %arg2, %c0_i32_8 : i32
    %10 = arith.extui %9 : i1 to i32
    %c0_i32_9 = arith.constant 0 : i32
    %11 = arith.cmpi ne, %10, %c0_i32_9 : i32
    scf.if %11 {
      %c0_10 = arith.constant 0 : index
      %c0_11 = arith.constant 0 : index
      %12 = vector.load %arg9[%c0_10, %c0_11] : memref<16x32xf32, #tpu.memory_space<vmem>>, vector<16x32xf32>
      %c0_12 = arith.constant 0 : index
      %c0_13 = arith.constant 0 : index
      %13 = vector.load %arg5[%c0_12, %c0_13] : memref<1x32xf32, #tpu.memory_space<vmem>>, vector<1x32xf32>
      %14 = vector.broadcast %13 : vector<1x32xf32> to vector<16x32xf32>
      %15 = arith.addf %12, %14 : vector<16x32xf32>
      %c0_14 = arith.constant 0 : index
      %c0_15 = arith.constant 0 : index
      %16 = vector.load %arg7[%c0_14, %c0_15] : memref<1x32xf32, #tpu.memory_space<vmem>>, vector<1x32xf32>
      %17 = vector.broadcast %16 : vector<1x32xf32> to vector<16x32xf32>
      %18 = arith.mulf %15, %17 : vector<16x32xf32>
      %c0_16 = arith.constant 0 : index
      %c0_17 = arith.constant 0 : index
      %19 = vector.load %arg6[%c0_16, %c0_17] : memref<16x32xbf16, #tpu.memory_space<vmem>>, vector<16x32xbf16>
      %20 = arith.extf %19 : vector<16x32xbf16> to vector<16x32xf32>
      %21 = arith.addf %20, %18 : vector<16x32xf32>
      %22 = arith.truncf %21 : vector<16x32xf32> to vector<16x32xbf16>
      %c0_18 = arith.constant 0 : index
      %c0_19 = arith.constant 0 : index
      %23 = vector.load %arg8[%c0_18, %c0_19] : memref<16x32xbf16, #tpu.memory_space<vmem>>, vector<16x32xbf16>
      tpu.vector_store %arg8[%c0_18, %c0_19], %22 {strides = array<i32>} : memref<16x32xbf16, #tpu.memory_space<vmem>>, vector<16x32xbf16>,
    } else {
    }
    return
  }
  func.func @transform_0(%arg0: i32, %arg1: i32, %arg2: i32) -> (i32, i32) {
    %c0_i32 = arith.constant 0 : i32
    return %arg0, %arg2 : i32, i32
  }
  func.func @transform_1(%arg0: i32, %arg1: i32, %arg2: i32) -> (i32, i32) {
    %c0_i32 = arith.constant 0 : i32
    return %arg2, %arg1 : i32, i32
  }
  func.func @transform_2(%arg0: i32, %arg1: i32, %arg2: i32) -> (i32, i32) {
    %c0_i32 = arith.constant 0 : i32
    %c0_i32_0 = arith.constant 0 : i32
    return %c0_i32, %arg1 : i32, i32
  }
  func.func @transform_3(%arg0: i32, %arg1: i32, %arg2: i32) -> (i32, i32) {
    %c0_i32 = arith.constant 0 : i32
    return %arg0, %arg1 : i32, i32
  }
  func.func @transform_4(%arg0: i32, %arg1: i32, %arg2: i32) -> (i32, i32) {
    %c0_i32 = arith.constant 0 : i32
    %c0_i32_0 = arith.constant 0 : i32
    return %c0_i32, %arg1 : i32, i32
  }
  func.func @transform_5(%arg0: i32, %arg1: i32, %arg2: i32) -> (i32, i32) {
    %c0_i32 = arith.constant 0 : i32
    return %arg0, %arg1 : i32, i32
  }
}

module attributes {stable_mosaic.version = 11 : i64} {
  func.func @_ln_mm_kernel(%arg0: i32, %arg1: i32, %arg2: memref<16x32xbf16, #tpu.memory_space<vmem>>, %arg3: memref<1x32xf32, #tpu.memory_space<vmem>>, %arg4: memref<1x32xf32, #tpu.memory_space<vmem>>, %arg5: memref<32x128xbf16, #tpu.memory_space<vmem>>, %arg6: memref<1x128xf32, #tpu.memory_space<vmem>>, %arg7: memref<16x128xbf16, #tpu.memory_space<vmem>>, %arg8: memref<16x32xbf16, #tpu.memory_space<vmem>>) attributes {dimension_semantics = [#tpu.dimension_semantics<parallel>, #tpu.dimension_semantics<arbitrary>], iteration_bounds = array<i64: 1, 1>, scalar_prefetch = 0 : i64, scratch_operands = 1 : i64, tpu.core_type = #tpu.core_type<tc>, window_params = [{transform_indices = @transform_0, window_bounds = array<i64: 16, 32>}, {pipeline_mode = #tpu.pipeline_mode<synchronous>, transform_indices = @transform_1, window_bounds = array<i64: 1, 32>}, {pipeline_mode = #tpu.pipeline_mode<synchronous>, transform_indices = @transform_2, window_bounds = array<i64: 1, 32>}, {transform_indices = @transform_3, window_bounds = array<i64: 32, 128>}, {transform_indices = @transform_4, window_bounds = array<i64: 1, 128>}, {transform_indices = @transform_5, window_bounds = array<i64: 16, 128>}]} {
    %c0_i32 = arith.constant 0 : i32
    %0 = arith.cmpi eq, %arg1, %c0_i32 : i32
    %1 = arith.extui %0 : i1 to i32
    %c0_i32_0 = arith.constant 0 : i32
    %2 = arith.cmpi ne, %1, %c0_i32_0 : i32
    scf.if %2 {
      %c0_12 = arith.constant 0 : index
      %c0_13 = arith.constant 0 : index
      %24 = vector.load %arg2[%c0_12, %c0_13] : memref<16x32xbf16, #tpu.memory_space<vmem>>, vector<16x32xbf16>
      %25 = arith.extf %24 : vector<16x32xbf16> to vector<16x32xf32>
      %cst_14 = arith.constant dense<0.000000e+00> : vector<16xf32>
      %26 = vector.multi_reduction <add>, %25, %cst_14 [1] : vector<16x32xf32> to vector<16xf32>
      %27 = vector.shape_cast %26 : vector<16xf32> to vector<16x1xf32>
      %cst_15 = arith.constant 3.200000e+01 : f32
      %28 = vector.broadcast %cst_15 : f32 to vector<16x1xf32>
      %29 = arith.divf %27, %28 : vector<16x1xf32>
      %30 = vector.broadcast %29 : vector<16x1xf32> to vector<16x32xf32>
      %31 = arith.subf %25, %30 : vector<16x32xf32>
      %32 = arith.mulf %31, %31 : vector<16x32xf32>
      %cst_16 = arith.constant dense<0.000000e+00> : vector<16xf32>
      %33 = vector.multi_reduction <add>, %32, %cst_16 [1] : vector<16x32xf32> to vector<16xf32>
      %34 = vector.shape_cast %33 : vector<16xf32> to vector<16x1xf32>
      %cst_17 = arith.constant 3.200000e+01 : f32
      %35 = vector.broadcast %cst_17 : f32 to vector<16x1xf32>
      %36 = arith.divf %34, %35 : vector<16x1xf32>
      %cst_18 = arith.constant 9.99999997E-7 : f32
      %37 = vector.broadcast %cst_18 : f32 to vector<16x1xf32>
      %38 = arith.addf %36, %37 : vector<16x1xf32>
      %39 = math.rsqrt %38 : vector<16x1xf32>
      %40 = vector.broadcast %39 : vector<16x1xf32> to vector<16x32xf32>
      %41 = arith.mulf %31, %40 : vector<16x32xf32>
      %c0_19 = arith.constant 0 : index
      %c0_20 = arith.constant 0 : index
      %42 = vector.load %arg3[%c0_19, %c0_20] : memref<1x32xf32, #tpu.memory_space<vmem>>, vector<1x32xf32>
      %43 = vector.broadcast %42 : vector<1x32xf32> to vector<16x32xf32>
      %44 = arith.mulf %41, %43 : vector<16x32xf32>
      %c0_21 = arith.constant 0 : index
      %c0_22 = arith.constant 0 : index
      %45 = vector.load %arg4[%c0_21, %c0_22] : memref<1x32xf32, #tpu.memory_space<vmem>>, vector<1x32xf32>
      %46 = vector.broadcast %45 : vector<1x32xf32> to vector<16x32xf32>
      %47 = arith.addf %44, %46 : vector<16x32xf32>
      %48 = arith.truncf %47 : vector<16x32xf32> to vector<16x32xbf16>
      %c0_23 = arith.constant 0 : index
      %c0_24 = arith.constant 0 : index
      %49 = vector.load %arg8[%c0_23, %c0_24] : memref<16x32xbf16, #tpu.memory_space<vmem>>, vector<16x32xbf16>
      tpu.vector_store %arg8[%c0_23, %c0_24], %48 {strides = array<i32>} : memref<16x32xbf16, #tpu.memory_space<vmem>>, vector<16x32xbf16>,
    } else {
    }
    %c0 = arith.constant 0 : index
    %c0_1 = arith.constant 0 : index
    %3 = vector.load %arg8[%c0, %c0_1] : memref<16x32xbf16, #tpu.memory_space<vmem>>, vector<16x32xbf16>
    %c0_2 = arith.constant 0 : index
    %c0_3 = arith.constant 0 : index
    %4 = vector.load %arg5[%c0_2, %c0_3] : memref<32x128xbf16, #tpu.memory_space<vmem>>, vector<32x128xbf16>
    %cst = arith.constant dense<0.000000e+00> : vector<16x128xf32>
    %5 = tpu.matmul %3, %4, %cst {dimension_numbers = #tpu.dot_dimension_numbers<[1], [0], [0], [1], [0, 0, 1, 1], [], []>} : vector<16x32xbf16>, vector<32x128xbf16>, vector<16x128xf32> -> vector<16x128xf32>
    %c0_4 = arith.constant 0 : index
    %c0_5 = arith.constant 0 : index
    %6 = vector.load %arg6[%c0_4, %c0_5] : memref<1x128xf32, #tpu.memory_space<vmem>>, vector<1x128xf32>
    %7 = vector.broadcast %6 : vector<1x128xf32> to vector<16x128xf32>
    %8 = arith.addf %5, %7 : vector<16x128xf32>
    %9 = arith.mulf %8, %8 : vector<16x128xf32>
    %10 = arith.mulf %8, %9 : vector<16x128xf32>
    %cst_6 = arith.constant 4.471500e-02 : f32
    %11 = vector.broadcast %cst_6 : f32 to vector<16x128xf32>
    %12 = arith.mulf %11, %10 : vector<16x128xf32>
    %13 = arith.addf %8, %12 : vector<16x128xf32>
    %cst_7 = arith.constant 0.797884583 : f32
    %14 = vector.broadcast %cst_7 : f32 to vector<16x128xf32>
    %15 = arith.mulf %14, %13 : vector<16x128xf32>
    %16 = math.tanh %15 : vector<16x128xf32>
    %cst_8 = arith.constant 1.000000e+00 : f32
    %17 = vector.broadcast %cst_8 : f32 to vector<16x128xf32>
    %18 = arith.addf %17, %16 : vector<16x128xf32>
    %cst_9 = arith.constant 5.000000e-01 : f32
    %19 = vector.broadcast %cst_9 : f32 to vector<16x128xf32>
    %20 = arith.mulf %19, %18 : vector<16x128xf32>
    %21 = arith.mulf %8, %20 : vector<16x128xf32>
    %22 = arith.truncf %21 : vector<16x128xf32> to vector<16x128xbf16>
    %c0_10 = arith.constant 0 : index
    %c0_11 = arith.constant 0 : index
    %23 = vector.load %arg7[%c0_10, %c0_11] : memref<16x128xbf16, #tpu.memory_space<vmem>>, vector<16x128xbf16>
    tpu.vector_store %arg7[%c0_10, %c0_11], %22 {strides = array<i32>} : memref<16x128xbf16, #tpu.memory_space<vmem>>, vector<16x128xbf16>,
    return
  }
  func.func @transform_0(%arg0: i32, %arg1: i32) -> (i32, i32) {
    %c0_i32 = arith.constant 0 : i32
    %c0_i32_0 = arith.constant 0 : i32
    return %arg0, %c0_i32 : i32, i32
  }
  func.func @transform_1(%arg0: i32, %arg1: i32) -> (i32, i32) {
    %c0_i32 = arith.constant 0 : i32
    %c0_i32_0 = arith.constant 0 : i32
    %c0_i32_1 = arith.constant 0 : i32
    return %c0_i32, %c0_i32_0 : i32, i32
  }
  func.func @transform_2(%arg0: i32, %arg1: i32) -> (i32, i32) {
    %c0_i32 = arith.constant 0 : i32
    %c0_i32_0 = arith.constant 0 : i32
    %c0_i32_1 = arith.constant 0 : i32
    return %c0_i32, %c0_i32_0 : i32, i32
  }
  func.func @transform_3(%arg0: i32, %arg1: i32) -> (i32, i32) {
    %c0_i32 = arith.constant 0 : i32
    %c0_i32_0 = arith.constant 0 : i32
    return %c0_i32, %arg1 : i32, i32
  }
  func.func @transform_4(%arg0: i32, %arg1: i32) -> (i32, i32) {
    %c0_i32 = arith.constant 0 : i32
    %c0_i32_0 = arith.constant 0 : i32
    return %c0_i32, %arg1 : i32, i32
  }
  func.func @transform_5(%arg0: i32, %arg1: i32) -> (i32, i32) {
    %c0_i32 = arith.constant 0 : i32
    return %arg0, %arg1 : i32, i32
  }
}

module attributes {stable_mosaic.version = 11 : i64} {
  func.func @_mm_res_ls_kernel(%arg0: i32, %arg1: i32, %arg2: i32, %arg3: memref<16x128xbf16, #tpu.memory_space<vmem>>, %arg4: memref<128x32xbf16, #tpu.memory_space<vmem>>, %arg5: memref<1x32xf32, #tpu.memory_space<vmem>>, %arg6: memref<16x32xbf16, #tpu.memory_space<vmem>>, %arg7: memref<1x32xf32, #tpu.memory_space<vmem>>, %arg8: memref<16x32xbf16, #tpu.memory_space<vmem>>, %arg9: memref<16x32xf32, #tpu.memory_space<vmem>>) attributes {dimension_semantics = [#tpu.dimension_semantics<parallel>, #tpu.dimension_semantics<parallel>, #tpu.dimension_semantics<arbitrary>], iteration_bounds = array<i64: 1, 1, 1>, scalar_prefetch = 0 : i64, scratch_operands = 1 : i64, tpu.core_type = #tpu.core_type<tc>, window_params = [{transform_indices = @transform_0, window_bounds = array<i64: 16, 128>}, {transform_indices = @transform_1, window_bounds = array<i64: 128, 32>}, {transform_indices = @transform_2, window_bounds = array<i64: 1, 32>}, {transform_indices = @transform_3, window_bounds = array<i64: 16, 32>}, {transform_indices = @transform_4, window_bounds = array<i64: 1, 32>}, {transform_indices = @transform_5, window_bounds = array<i64: 16, 32>}]} {
    %c0_i32 = arith.constant 0 : i32
    %0 = arith.cmpi eq, %arg2, %c0_i32 : i32
    %1 = arith.extui %0 : i1 to i32
    %c0_i32_0 = arith.constant 0 : i32
    %2 = arith.cmpi ne, %1, %c0_i32_0 : i32
    scf.if %2 {
      %cst_10 = arith.constant 0.000000e+00 : f32
      %12 = vector.broadcast %cst_10 : f32 to vector<16x32xf32>
      %c0_11 = arith.constant 0 : index
      %c0_12 = arith.constant 0 : index
      %13 = vector.load %arg9[%c0_11, %c0_12] : memref<16x32xf32, #tpu.memory_space<vmem>>, vector<16x32xf32>
      tpu.vector_store %arg9[%c0_11, %c0_12], %12 {strides = array<i32>} : memref<16x32xf32, #tpu.memory_space<vmem>>, vector<16x32xf32>,
    } else {
    }
    %c0 = arith.constant 0 : index
    %c0_1 = arith.constant 0 : index
    %3 = vector.load %arg9[%c0, %c0_1] : memref<16x32xf32, #tpu.memory_space<vmem>>, vector<16x32xf32>
    %c0_2 = arith.constant 0 : index
    %c0_3 = arith.constant 0 : index
    %4 = vector.load %arg3[%c0_2, %c0_3] : memref<16x128xbf16, #tpu.memory_space<vmem>>, vector<16x128xbf16>
    %c0_4 = arith.constant 0 : index
    %c0_5 = arith.constant 0 : index
    %5 = vector.load %arg4[%c0_4, %c0_5] : memref<128x32xbf16, #tpu.memory_space<vmem>>, vector<128x32xbf16>
    %cst = arith.constant dense<0.000000e+00> : vector<16x32xf32>
    %6 = tpu.matmul %4, %5, %cst {dimension_numbers = #tpu.dot_dimension_numbers<[1], [0], [0], [1], [0, 0, 1, 1], [], []>} : vector<16x128xbf16>, vector<128x32xbf16>, vector<16x32xf32> -> vector<16x32xf32>
    %7 = arith.addf %3, %6 : vector<16x32xf32>
    %c0_6 = arith.constant 0 : index
    %c0_7 = arith.constant 0 : index
    %8 = vector.load %arg9[%c0_6, %c0_7] : memref<16x32xf32, #tpu.memory_space<vmem>>, vector<16x32xf32>
    tpu.vector_store %arg9[%c0_6, %c0_7], %7 {strides = array<i32>} : memref<16x32xf32, #tpu.memory_space<vmem>>, vector<16x32xf32>,
    %c0_i32_8 = arith.constant 0 : i32
    %9 = arith.cmpi eq, %arg2, %c0_i32_8 : i32
    %10 = arith.extui %9 : i1 to i32
    %c0_i32_9 = arith.constant 0 : i32
    %11 = arith.cmpi ne, %10, %c0_i32_9 : i32
    scf.if %11 {
      %c0_10 = arith.constant 0 : index
      %c0_11 = arith.constant 0 : index
      %12 = vector.load %arg9[%c0_10, %c0_11] : memref<16x32xf32, #tpu.memory_space<vmem>>, vector<16x32xf32>
      %c0_12 = arith.constant 0 : index
      %c0_13 = arith.constant 0 : index
      %13 = vector.load %arg5[%c0_12, %c0_13] : memref<1x32xf32, #tpu.memory_space<vmem>>, vector<1x32xf32>
      %14 = vector.broadcast %13 : vector<1x32xf32> to vector<16x32xf32>
      %15 = arith.addf %12, %14 : vector<16x32xf32>
      %c0_14 = arith.constant 0 : index
      %c0_15 = arith.constant 0 : index
      %16 = vector.load %arg7[%c0_14, %c0_15] : memref<1x32xf32, #tpu.memory_space<vmem>>, vector<1x32xf32>
      %17 = vector.broadcast %16 : vector<1x32xf32> to vector<16x32xf32>
      %18 = arith.mulf %15, %17 : vector<16x32xf32>
      %c0_16 = arith.constant 0 : index
      %c0_17 = arith.constant 0 : index
      %19 = vector.load %arg6[%c0_16, %c0_17] : memref<16x32xbf16, #tpu.memory_space<vmem>>, vector<16x32xbf16>
      %20 = arith.extf %19 : vector<16x32xbf16> to vector<16x32xf32>
      %21 = arith.addf %20, %18 : vector<16x32xf32>
      %22 = arith.truncf %21 : vector<16x32xf32> to vector<16x32xbf16>
      %c0_18 = arith.constant 0 : index
      %c0_19 = arith.constant 0 : index
      %23 = vector.load %arg8[%c0_18, %c0_19] : memref<16x32xbf16, #tpu.memory_space<vmem>>, vector<16x32xbf16>
      tpu.vector_store %arg8[%c0_18, %c0_19], %22 {strides = array<i32>} : memref<16x32xbf16, #tpu.memory_space<vmem>>, vector<16x32xbf16>,
    } else {
    }
    return
  }
  func.func @transform_0(%arg0: i32, %arg1: i32, %arg2: i32) -> (i32, i32) {
    %c0_i32 = arith.constant 0 : i32
    return %arg0, %arg2 : i32, i32
  }
  func.func @transform_1(%arg0: i32, %arg1: i32, %arg2: i32) -> (i32, i32) {
    %c0_i32 = arith.constant 0 : i32
    return %arg2, %arg1 : i32, i32
  }
  func.func @transform_2(%arg0: i32, %arg1: i32, %arg2: i32) -> (i32, i32) {
    %c0_i32 = arith.constant 0 : i32
    %c0_i32_0 = arith.constant 0 : i32
    return %c0_i32, %arg1 : i32, i32
  }
  func.func @transform_3(%arg0: i32, %arg1: i32, %arg2: i32) -> (i32, i32) {
    %c0_i32 = arith.constant 0 : i32
    return %arg0, %arg1 : i32, i32
  }
  func.func @transform_4(%arg0: i32, %arg1: i32, %arg2: i32) -> (i32, i32) {
    %c0_i32 = arith.constant 0 : i32
    %c0_i32_0 = arith.constant 0 : i32
    return %c0_i32, %arg1 : i32, i32
  }
  func.func @transform_5(%arg0: i32, %arg1: i32, %arg2: i32) -> (i32, i32) {
    %c0_i32 = arith.constant 0 : i32
    return %arg0, %arg1 : i32, i32
  }
}

</mosaic_0001>

<llo_original>
// kernel: dinov2_forward.11
$region0: #{dinov2_forward.11}
  #allocation0 [shape = 'u32[]', space=smem, size = 0x4, offset = 0x4, fixed_abs, tag = 'smem constant byte address 0x4 - core index']
  #allocation1 [shape = 'u32[144,128]{1,0:T(1,128)}', space=vmem, size = 0x12000, scoped, tag = 'internal scratch']
  #allocation2 [shape = 'f32[8,32]{1,0:T(8,128)}', space=vmem, size = 0x1000, scoped, tag = 'scratch operand']
  %s0 = inlined_call_operand.vmem [shape: f32[8,640], index: 0, kind: input, shape index: {}]
  %s1 = inlined_call_operand.vmem [shape: bf16[640,32], index: 1, kind: input, shape index: {}]
  %s2 = inlined_call_operand.vmem [shape: f32[1,32], index: 2, kind: input, shape index: {}]
  %s3 = inlined_call_operand.vmem [shape: bf16[8,32], index: 3, kind: output, shape index: {}]
  %s4 = sld [smem:[#allocation0]]
  $region53: #{dinov2_forward.11} parent=0
    _
  %s6 = ssub.s32 1, %s4
  %s7 = scalar_select 0, %s6, %s4
  loop: start=0, step=1, limit=7
  $region2: #{dinov2_forward.11} parent=0 // loop_pre_header
    _
  $region3: #{dinov2_forward.11} parent=0 // loop_header
    %s9 = sphi 0, %s13
    %p10 = scmp.ge.s32.totalorder %s9, 7
    %s16 = sphi 0, %s35
    %s17 = sphi 0, %s31
    %s18 = sphi 0, %s27
    %s19 = sphi 0, %s16
    %s20 = sphi 0, %s17
    %s21 = sphi 0, %s18
    %s22 = sphi 0, %s19
    %s23 = sphi 0, %s20
    %s24 = sphi 0, %s21
    %s40 = sphi 0, %s42
    %s43 = sphi 0, %s40
    %s44 = sphi 0, %s43
    %s60 = sphi 0, %s44
    %s68 = sphi 0, %s70
    %s71 = sphi 0, %s68
    %s72 = sphi 0, %s71
    %s88 = sphi 0, %s72
    %s94 = sphi 0, %s96
    %s97 = sphi 0, %s94
    %s98 = sphi 0, %s97
    %s114 = sphi 0, %s98
    %s122 = sphi 0, %s124
    %s125 = sphi 0, %s122
    %s126 = sphi 0, %s125
    %s142 = sphi 0, %s126
  $region4: #{dinov2_forward.11} parent=0 // loop_header_branch
    %12 = sbr.rel (%p10) target = $region8
  $region5: #{dinov2_forward.11} parent=0 // loop_body
    %s14 = ssub.s32 %s9, 1
    %s15 = ssub.s32 %s9, 2
    %s25 = sadd.s32 1, %s18
    %p26 = scmp.ge.s32.totalorder %s25, 5
    %s27 = scalar_select %p26, 0, %s25
    %s28 = sadd.s32 1, %s17
    %s29 = scalar_select %p26, %s28, %s17
    %p30 = scmp.ge.s32.totalorder %s29, 1
    %s31 = scalar_select %p30, 0, %s29
    %s32 = sadd.s32 1, %s16
    %s33 = scalar_select %p30, %s32, %s16
    %p34 = scmp.ge.s32.totalorder %s33, 1
    %s35 = scalar_select %p34, 0, %s33
    %s36 = ssub.s32 %s16, %s35
    %s37 = ssub.s32 %s18, %s27
    %s38 = sor.u32 %s36, %s37
    %p39 = scmp.eq.s32.totalorder %s38, 0
    %s41 = sadd.s32 %s40, 1
    %s42 = scalar_select %p39, %s40, %s41
    %p45 = pneg %p39
    %p46 = scmp.eq.s32.totalorder %s9, 4
    %p47 = por %p45, %p46
    %p48 = scmp.ne.s32.totalorder %s40, %s43
    %p49 = scmp.eq.s32.totalorder %s9, 0
    %p50 = por %p48, %p49
    %p51 = scmp.ne.s32.totalorder %s40, %s43
    %p52 = scmp.eq.s32.totalorder %s14, 4
    %p53 = por %p51, %p52
    %p54 = scmp.ne.s32.totalorder %s43, %s44
    %p55 = scmp.eq.s32.totalorder %s14, 0
    %p56 = por %p54, %p55
    %p57 = scmp.ne.s32.totalorder %s43, %s44
    %p58 = scmp.eq.s32.totalorder %s15, 4
    %p59 = por %p57, %p58
    %p61 = scmp.ne.s32.totalorder %s44, %s60
    %p62 = scmp.eq.s32.totalorder %s15, 0
    %p63 = por %p61, %p62
    %s64 = ssub.s32 %s18, %s27
    %s65 = ssub.s32 %s17, %s31
    %s66 = sor.u32 %s64, %s65
    %p67 = scmp.eq.s32.totalorder %s66, 0
    %s69 = sadd.s32 %s68, 1
    %s70 = scalar_select %p67, %s68, %s69
    %p73 = pneg %p67
    %p74 = scmp.eq.s32.totalorder %s9, 4
    %p75 = por %p73, %p74
    %p76 = scmp.ne.s32.totalorder %s68, %s71
    %p77 = scmp.eq.s32.totalorder %s9, 0
    %p78 = por %p76, %p77
    %p79 = scmp.ne.s32.totalorder %s68, %s71
    %p80 = scmp.eq.s32.totalorder %s14, 4
    %p81 = por %p79, %p80
    %p82 = scmp.ne.s32.totalorder %s71, %s72
    %p83 = scmp.eq.s32.totalorder %s14, 0
    %p84 = por %p82, %p83
    %p85 = scmp.ne.s32.totalorder %s71, %s72
    %p86 = scmp.eq.s32.totalorder %s15, 4
    %p87 = por %p85, %p86
    %p89 = scmp.ne.s32.totalorder %s72, %s88
    %p90 = scmp.eq.s32.totalorder %s15, 0
    %p91 = por %p89, %p90
    %s92 = ssub.s32 %s17, %s31
    %p93 = scmp.eq.s32.totalorder %s92, 0
    %s95 = sadd.s32 %s94, 1
    %s96 = scalar_select %p93, %s94, %s95
    %p99 = pneg %p93
    %p100 = scmp.eq.s32.totalorder %s9, 4
    %p101 = por %p99, %p100
    %p102 = scmp.ne.s32.totalorder %s94, %s97
    %p103 = scmp.eq.s32.totalorder %s9, 0
    %p104 = por %p102, %p103
    %p105 = scmp.ne.s32.totalorder %s94, %s97
    %p106 = scmp.eq.s32.totalorder %s14, 4
    %p107 = por %p105, %p106
    %p108 = scmp.ne.s32.totalorder %s97, %s98
    %p109 = scmp.eq.s32.totalorder %s14, 0
    %p110 = por %p108, %p109
    %p111 = scmp.ne.s32.totalorder %s97, %s98
    %p112 = scmp.eq.s32.totalorder %s15, 4
    %p113 = por %p111, %p112
    %p115 = scmp.ne.s32.totalorder %s98, %s114
    %p116 = scmp.eq.s32.totalorder %s15, 0
    %p117 = por %p115, %p116
    %s118 = ssub.s32 %s16, %s35
    %s119 = ssub.s32 %s17, %s31
    %s120 = sor.u32 %s118, %s119
    %p121 = scmp.eq.s32.totalorder %s120, 0
    %s123 = sadd.s32 %s122, 1
    %s124 = scalar_select %p121, %s122, %s123
    %p127 = pneg %p121
    %p128 = scmp.eq.s32.totalorder %s9, 4
    %p129 = por %p127, %p128
    %p130 = scmp.ne.s32.totalorder %s122, %s125
    %p131 = scmp.eq.s32.totalorder %s9, 0
    %p132 = por %p130, %p131
    %p133 = scmp.ne.s32.totalorder %s122, %s125
    %p134 = scmp.eq.s32.totalorder %s14, 4
    %p135 = por %p133, %p134
    %p136 = scmp.ne.s32.totalorder %s125, %s126
    %p137 = scmp.eq.s32.totalorder %s14, 0
    %p138 = por %p136, %p137
    %p139 = scmp.ne.s32.totalorder %s125, %s126
    %p140 = scmp.eq.s32.totalorder %s15, 4
    %p141 = por %p139, %p140
    %p143 = scmp.ne.s32.totalorder %s126, %s142
    %p144 = scmp.eq.s32.totalorder %s15, 0
    %p145 = por %p143, %p144
    %p146 = scmp.le.s32.totalorder 1, %s9
    %p147 = scmp.lt.s32.totalorder %s9, 6
    %p148 = pnand %p146, %p147
    %p149 = pneg %p148
    // Predicated region
    $region9: #{dinov2_forward.11} parent=5 // pred_check
      _
    $region10: #{dinov2_forward.11} parent=5 // pred_check_branch
      %151 = sbr.rel (%p148) target = $region12
    $region11: #{dinov2_forward.11} parent=5 // pred_region
      %s152 = ssub.s32 %s9, 1
      // Predicated region
      $region13: #{dinov2_forward.11} parent=11 // pred_check
        %p153 = pneg %p110
      $region14: #{dinov2_forward.11} parent=11 // pred_check_branch
        %155 = sbr.rel (%p153) target = $region16
      $region15: #{dinov2_forward.11} parent=11 // pred_region
        %p156 = scmp.lt.s32.totalorder %s20, 0
        %s157 = scalar_select %p156, %s20, 0
        %s158 = scalar_lea.vmem %s2, %s157
      $region16: #{dinov2_forward.11} parent=11 // pred_fallthru
        _
    $region12: #{dinov2_forward.11} parent=5 // pred_fallthru
      _
    %p159 = scmp.lt.s32.totalorder %s9, 5
    // Predicated region
    $region17: #{dinov2_forward.11} parent=5 // pred_check
      %p160 = pneg %p159
    $region18: #{dinov2_forward.11} parent=5 // pred_check_branch
      %162 = sbr.rel (%p160) target = $region20
    $region19: #{dinov2_forward.11} parent=5 // pred_region
      // Predicated region
      $region21: #{dinov2_forward.11} parent=19 // pred_check
        %p163 = pneg %p50
      $region22: #{dinov2_forward.11} parent=19 // pred_check_branch
        %165 = sbr.rel (%p163) target = $region24
      $region23: #{dinov2_forward.11} parent=19 // pred_region
        %p166 = scmp.lt.s32.totalorder %s16, 0
        %s167 = scalar_select %p166, %s16, 0
        %p168 = scmp.lt.s32.totalorder %s18, 4
        %s169 = scalar_select %p168, %s18, 4
        %s170 = smul.addr %s167, 5
        %s171 = sadd.s32 %s169, %s170
        %s172 = smul.addr %s171, 8
        %s173 = scalar_lea.vmem %s0, %s172
      $region24: #{dinov2_forward.11} parent=19 // pred_fallthru
        _
      // Predicated region
      $region25: #{dinov2_forward.11} parent=19 // pred_check
        %p174 = pneg %p78
      $region26: #{dinov2_forward.11} parent=19 // pred_check_branch
        %176 = sbr.rel (%p174) target = $region28
      $region27: #{dinov2_forward.11} parent=19 // pred_region
        %s177 = smul.u32 16, %s18
        %p178 = scmp.lt.s32.totalorder %s177, 79
        %s179 = scalar_select %p178, %s177, 79
        %p180 = scmp.lt.s32.totalorder %s17, 0
        %s181 = scalar_select %p180, %s17, 0
        %s182 = sadd.s32 %s181, %s179
        %s183 = smul.addr %s182, 4
        %s184 = scalar_lea.vmem %s1, %s183
        %s185 = smul.u32 16, %s18
      $region28: #{dinov2_forward.11} parent=19 // pred_fallthru
        _
    $region20: #{dinov2_forward.11} parent=5 // pred_fallthru
      _
    %p186 = scmp.le.s32.totalorder 1, %s9
    %p187 = scmp.lt.s32.totalorder %s9, 6
    %p188 = pnand %p186, %p187
    %p189 = pneg %p188
    // Predicated region
    $region29: #{dinov2_forward.11} parent=5 // pred_check
      _
    $region30: #{dinov2_forward.11} parent=5 // pred_check_branch
      %191 = sbr.rel (%p188) target = $region32
    $region31: #{dinov2_forward.11} parent=5 // pred_region
      %s192 = ssub.s32 %s9, 1
      %p193 = scmp.lt.s32.totalorder %s19, 0
      %s194 = scalar_select %p193, %s19, 0
      %p195 = scmp.lt.s32.totalorder %s21, 4
      %s196 = scalar_select %p195, %s21, 4
      %s197 = smul.addr %s194, 5
      %s198 = sadd.s32 %s196, %s197
      %s199 = smul.addr %s198, 8
      %s200 = scalar_lea.vmem %s0, %s199
      %p201 = pneg %p56
      %p202 = pneg %p53
      %s203 = smul.u32 16, %s21
      %p204 = scmp.lt.s32.totalorder %s203, 79
      %s205 = scalar_select %p204, %s203, 79
      %p206 = scmp.lt.s32.totalorder %s20, 0
      %s207 = scalar_select %p206, %s20, 0
      %s208 = sadd.s32 %s207, %s205
      %s209 = smul.addr %s208, 4
      %s210 = scalar_lea.vmem %s1, %s209
      %p211 = pneg %p84
      %p212 = pneg %p81
      %p213 = scmp.lt.s32.totalorder %s20, 0
      %s214 = scalar_select %p213, %s20, 0
      %s215 = scalar_lea.vmem %s2, %s214
      %p216 = pneg %p110
      %p217 = pneg %p107
      %p218 = pneg %p138
      %p219 = pneg %p135
      %p220 = scmp.lt.s32.totalorder %s19, 0
      %s221 = scalar_select %p220, %s19, 0
      %p222 = scmp.lt.s32.totalorder %s20, 0
      %s223 = scalar_select %p222, %s20, 0
      %s224 = sadd.s32 %s223, %s221
      %s225 = smul.addr %s224, 4
      %s226 = scalar_lea.vmem %s3, %s225
      %p227 = scmp.lt.s32.totalorder %s19, 0
      %s228 = scalar_select %p227, %s19, 0
      %p229 = scmp.lt.s32.totalorder %s21, 4
      %s230 = scalar_select %p229, %s21, 4
      %s231 = smul.addr %s228, 5
      %s232 = sadd.s32 %s230, %s231
      %s233 = smul.addr %s232, 8
      %s234 = scalar_lea.vmem %s0, %s233
      %s235 = smul.u32 16, %s21
      %p236 = scmp.lt.s32.totalorder %s235, 79
      %s237 = scalar_select %p236, %s235, 79
      %p238 = scmp.lt.s32.totalorder %s20, 0
      %s239 = scalar_select %p238, %s20, 0
      %s240 = sadd.s32 %s239, %s237
      %s241 = smul.addr %s240, 4
      %s242 = scalar_lea.vmem %s1, %s241
      %s243 = smul.u32 16, %s21
      %p244 = scmp.lt.s32.totalorder %s20, 0
      %s245 = scalar_select %p244, %s20, 0
      %s246 = scalar_lea.vmem %s2, %s245
      %p247 = scmp.lt.s32.totalorder %s19, 0
      %s248 = scalar_select %p247, %s19, 0
      %p249 = scmp.lt.s32.totalorder %s20, 0
      %s250 = scalar_select %p249, %s20, 0
      %s251 = sadd.s32 %s250, %s248
      %s252 = smul.addr %s251, 4
      %s253 = scalar_lea.vmem %s3, %s252
      %p255 = scmp.eq.s32.totalorder %s21, 0
      // Predicated region
      $region33: #{dinov2_forward.11} parent=31 // pred_check
        %p256 = pneg %p255
      $region34: #{dinov2_forward.11} parent=31 // pred_check_branch
        %258 = sbr.rel (%p256) target = $region36
      $region35: #{dinov2_forward.11} parent=31 // pred_region
        %vm259 = vcmask 261120
        %260 = vst.msk [vmem:[#allocation2] sm:$0xff] %vm259, 0.0
      $region36: #{dinov2_forward.11} parent=31 // pred_fallthru
        _
      %v261 = vld [vmem:[#allocation2] sm:$0xff]
      %v262 = vld [vmem:[%s234] sm:$0xff]
      %v263 = vpack.c.bf16 %v262, %v262
      %v264 = vld [vmem:[%s242] sm:$0xf]
      %v265 = vld [vmem:[%s242 + $0x4] sm:$0xf]
      %v266 = vld [vmem:[%s242 + $0x8] sm:$0xf]
      %v267 = vld [vmem:[%s242 + $0xc] sm:$0xf]
      %v268 = vld [vmem:[%s242 + $0x10] sm:$0xf]
      %v269 = vld [vmem:[%s242 + $0x14] sm:$0xf]
      %v270 = vld [vmem:[%s242 + $0x18] sm:$0xf]
      %v271 = vld [vmem:[%s242 + $0x1c] sm:$0xf]
      %v272 = vld [vmem:[%s242 + $0x20] sm:$0xf]
      %v273 = vld [vmem:[%s242 + $0x24] sm:$0xf]
      %v274 = vld [vmem:[%s242 + $0x28] sm:$0xf]
      %v275 = vld [vmem:[%s242 + $0x2c] sm:$0xf]
      %v276 = vld [vmem:[%s242 + $0x30] sm:$0xf]
      %v277 = vld [vmem:[%s242 + $0x34] sm:$0xf]
      %v278 = vld [vmem:[%s242 + $0x38] sm:$0xf]
      %v279 = vld [vmem:[%s242 + $0x3c] sm:$0xf]
      %v296 = vunpack.c.l.b16 %v264
      %v297 = vunpack.c.l.b16 %v265
      %v298 = vunpack.c.l.b16 %v266
      %v299 = vunpack.c.l.b16 %v267
      %v300 = vunpack.c.l.b16 %v268
      %v301 = vunpack.c.l.b16 %v269
      %v302 = vunpack.c.l.b16 %v270
      %v303 = vunpack.c.l.b16 %v271
      %v304 = vunpack.c.l.b16 %v272
      %v305 = vunpack.c.l.b16 %v273
      %v306 = vunpack.c.l.b16 %v274
      %v307 = vunpack.c.l.b16 %v275
      %v308 = vunpack.c.l.b16 %v276
      %v309 = vunpack.c.l.b16 %v277
      %v310 = vunpack.c.l.b16 %v278
      %v311 = vunpack.c.l.b16 %v279
      %v312 = vpack.c.b16 %v297, %v296
      %v313 = vpack.c.b16 %v299, %v298
      %v314 = vpack.c.b16 %v301, %v300
      %v315 = vpack.c.b16 %v303, %v302
      %v316 = vpack.c.b16 %v305, %v304
      %v317 = vpack.c.b16 %v307, %v306
      %v318 = vpack.c.b16 %v309, %v308
      %v319 = vpack.c.b16 %v311, %v310
      %328 = vmatprep.subr.bf16.mxu0 0
      %329 = vmatpush1.bf16.msra.mxu0 %v312
      %330 = vmatprep.subr.bf16.mxu0 0
      %331 = vmatpush1.bf16.msra.mxu0 %v313
      %332 = vmatprep.subr.bf16.mxu0 0
      %333 = vmatpush1.bf16.msra.mxu0 %v314
      %334 = vmatprep.subr.bf16.mxu0 0
      %335 = vmatpush1.bf16.msra.mxu0 %v315
      %336 = vmatprep.subr.bf16.mxu0 0
      %337 = vmatpush1.bf16.msra.mxu0 %v316
      %338 = vmatprep.subr.bf16.mxu0 0
      %339 = vmatpush1.bf16.msra.mxu0 %v317
      %340 = vmatprep.subr.bf16.mxu0 0
      %341 = vmatpush1.bf16.msra.mxu0 %v318
      %342 = vmatprep.subr.bf16.mxu0 0
      %343 = vmatpush1.bf16.msra.mxu0 %v319
      %344 = vmatprep.subr.bf16.mxu0 0
      %345 = vmatpush1.bf16.msra.mxu0 0
      %346 = vmatprep.subr.bf16.mxu0 0
      %347 = vmatpush1.bf16.msra.mxu0 0
      %348 = vmatprep.subr.bf16.mxu0 0
      %349 = vmatpush1.bf16.msra.mxu0 0
      %350 = vmatprep.subr.bf16.mxu0 0
      %351 = vmatpush1.bf16.msra.mxu0 0
      %352 = vmatprep.subr.bf16.mxu0 0
      %353 = vmatpush1.bf16.msra.mxu0 0
      %354 = vmatprep.subr.bf16.mxu0 0
      %355 = vmatpush1.bf16.msra.mxu0 0
      %356 = vmatprep.subr.bf16.mxu0 0
      %357 = vmatpush1.bf16.msra.mxu0 0
      %358 = vmatprep.subr.bf16.mxu0 0
      %359 = vmatpush1.bf16.msra.mxu0 0
      %360 = vmatprep.mubr.bf16.mxu0 0
      %361 = vmatmul.mubr.bf16.gmra.mrb[0].mxu0 %v263
      %v362 = vpop.f32.mrb[0].mxu0
      %v363 = vadd.f32 0.0, %v362
      %v364 = vpop.f32.mrb[0].mxu0
      %v365 = vpop.f32.mrb[0].mxu0
      %v366 = vpop.f32.mrb[0].mxu0
      %367 = vdwg.mxu0
      %v368 = vadd.f32 %v261, %v363
      %vm369 = vcmask 261120
      %370 = vst.msk [vmem:[#allocation2] sm:$0xff] %vm369, %v368
      %p371 = scmp.eq.s32.totalorder %s21, 4
      // Predicated region
      $region37: #{dinov2_forward.11} parent=31 // pred_check
        %p372 = pneg %p371
      $region38: #{dinov2_forward.11} parent=31 // pred_check_branch
        %374 = sbr.rel (%p372) target = $region40
      $region39: #{dinov2_forward.11} parent=31 // pred_region
        %v375 = vld [vmem:[#allocation2] sm:$0xff]
        %v376 = vld [vmem:[%s246] sm:$0x1]
        %v378 = vlaneseq
        %v379 = vshrl.u32 %v378, 7
        %v380 = vsub.s32 0, %v379
        %v381 = vrot.slane %v376, %v380
        %v383 = vadd.f32 %v375, %v381
        %v384 = vpack.c.bf16 %v383, %v383
        %vm385 = vcmask 257024
        %386 = vst.msk [vmem:[%s253] sm:$0xf] %vm385, %v384
      $region40: #{dinov2_forward.11} parent=31 // pred_fallthru
        _
      %p387 = scmp.lt.s32.totalorder %s19, 0
      %s388 = scalar_select %p387, %s19, 0
      %p389 = scmp.lt.s32.totalorder %s20, 0
      %s390 = scalar_select %p389, %s20, 0
      %s391 = sadd.s32 %s390, %s388
      %s392 = smul.addr %s391, 4
      %s393 = scalar_lea.vmem %s3, %s392
      // Predicated region
      $region41: #{dinov2_forward.11} parent=31 // pred_check
        %p394 = pneg %p135
      $region42: #{dinov2_forward.11} parent=31 // pred_check_branch
        %396 = sbr.rel (%p394) target = $region44
      $region43: #{dinov2_forward.11} parent=31 // pred_region
        _
      $region44: #{dinov2_forward.11} parent=31 // pred_fallthru
        _
      // Predicated region
      $region45: #{dinov2_forward.11} parent=31 // pred_check
        %p397 = pneg %p135
      $region46: #{dinov2_forward.11} parent=31 // pred_check_branch
        %399 = sbr.rel (%p397) target = $region48
      $region47: #{dinov2_forward.11} parent=31 // pred_region
        %p400 = scmp.lt.s32.totalorder %s19, 0
        %s401 = scalar_select %p400, %s19, 0
        %p402 = scmp.lt.s32.totalorder %s20, 0
        %s403 = scalar_select %p402, %s20, 0
        %s404 = sadd.s32 %s403, %s401
        %s405 = smul.addr %s404, 4
        %s406 = scalar_lea.vmem %s3, %s405
      $region48: #{dinov2_forward.11} parent=31 // pred_fallthru
        _
    $region32: #{dinov2_forward.11} parent=5 // pred_fallthru
      _
    %p407 = scmp.le.s32.totalorder 2, %s9
    // Predicated region
    $region49: #{dinov2_forward.11} parent=5 // pred_check
      %p408 = pneg %p407
    $region50: #{dinov2_forward.11} parent=5 // pred_check_branch
      %410 = sbr.rel (%p408) target = $region52
    $region51: #{dinov2_forward.11} parent=5 // pred_region
      %s411 = ssub.s32 %s9, 2
    $region52: #{dinov2_forward.11} parent=5 // pred_fallthru
      _
  $region6: #{dinov2_forward.11} parent=0 // loop_footer
    %s13 = sadd.s32 1, %s9
  $region7: #{dinov2_forward.11} parent=0 // loop_footer_branch
    %8 = sbr.rel target = $region3
  $region8: #{dinov2_forward.11} parent=0 // loop_exit
    _

// kernel: dinov2_forward.12
$region0: #{dinov2_forward.12}
  #allocation0 [shape = 'u32[]', space=smem, size = 0x4, offset = 0x4, fixed_abs, tag = 'smem constant byte address 0x4 - core index']
  #allocation1 [shape = 'u32[144,128]{1,0:T(1,128)}', space=vmem, size = 0x12000, scoped, tag = 'internal scratch']
  #allocation2 [shape = 'bf16[16,32]{1,0:T(16,128)(2,1)}', space=vmem, size = 0x1000, scoped, tag = 'scratch operand']
  %s0 = inlined_call_operand.vmem [shape: bf16[10,32], index: 0, kind: input, shape index: {}]
  %s1 = inlined_call_operand.vmem [shape: f32[1,32], index: 1, kind: input, shape index: {}]
  %s2 = inlined_call_operand.vmem [shape: f32[1,32], index: 2, kind: input, shape index: {}]
  %s3 = inlined_call_operand.vmem [shape: bf16[32,96], index: 3, kind: input, shape index: {}]
  %s4 = inlined_call_operand.vmem [shape: f32[1,96], index: 4, kind: input, shape index: {}]
  %s5 = inlined_call_operand.vmem [shape: bf16[10,96], index: 5, kind: output, shape index: {}]
  %s6 = sld [smem:[#allocation0]]
  $region34: #{dinov2_forward.12} parent=0
    _
  %s8 = ssub.s32 1, %s6
  %s9 = scalar_select 0, %s8, %s6
  // Predicated region
  $region2: #{dinov2_forward.12} parent=0 // pred_check
    _
  $region3: #{dinov2_forward.12} parent=0 // pred_check_branch
    %11 = sbr.rel (0) target = $region5
  $region4: #{dinov2_forward.12} parent=0 // pred_region
    _
  $region5: #{dinov2_forward.12} parent=0 // pred_fallthru
    _
  // Predicated region
  $region6: #{dinov2_forward.12} parent=0 // pred_check
    _
  $region7: #{dinov2_forward.12} parent=0 // pred_check_branch
    %13 = sbr.rel (0) target = $region9
  $region8: #{dinov2_forward.12} parent=0 // pred_region
    _
  $region9: #{dinov2_forward.12} parent=0 // pred_fallthru
    _
  // Predicated region
  $region10: #{dinov2_forward.12} parent=0 // pred_check
    _
  $region11: #{dinov2_forward.12} parent=0 // pred_check_branch
    %15 = sbr.rel (0) target = $region13
  $region12: #{dinov2_forward.12} parent=0 // pred_region
    _
  $region13: #{dinov2_forward.12} parent=0 // pred_fallthru
    _
  // Predicated region
  $region14: #{dinov2_forward.12} parent=0 // pred_check
    _
  $region15: #{dinov2_forward.12} parent=0 // pred_check_branch
    %17 = sbr.rel (0) target = $region17
  $region16: #{dinov2_forward.12} parent=0 // pred_region
    _
  $region17: #{dinov2_forward.12} parent=0 // pred_fallthru
    _
  // Predicated region
  $region18: #{dinov2_forward.12} parent=0 // pred_check
    _
  $region19: #{dinov2_forward.12} parent=0 // pred_check_branch
    %19 = sbr.rel (0) target = $region21
  $region20: #{dinov2_forward.12} parent=0 // pred_region
    _
  $region21: #{dinov2_forward.12} parent=0 // pred_fallthru
    _
  %p21 = scmp.eq.s32.totalorder 0, 0
  // Predicated region
  $region22: #{dinov2_forward.12} parent=0 // pred_check
    %p22 = pneg %p21
  $region23: #{dinov2_forward.12} parent=0 // pred_check_branch
    %24 = sbr.rel (%p22) target = $region25
  $region24: #{dinov2_forward.12} parent=0 // pred_region
    %v25 = vld [vmem:[%s0] sm:$0xf]
    %v26 = vld [vmem:[%s0 + $0x4] sm:$0xf]
    %v27 = vunpack.c.l.bf16 %v25
    %v28 = vunpack.c.l.bf16 %v26
    %vm29 = vcmask 261120
    %v30 = vsel %vm29, %v27, 0.0
    %31 = vadd.xlane.f32.xlu0 %v30
    %v32 = vpop.xlane.xlu0 %31
    %v33 = vsel %vm29, %v28, 0.0
    %34 = vadd.xlane.f32.xlu0 %v33
    %v35 = vpop.xlane.xlu0 %34
    %v36 = vrcp.pop 32.0
    %v37 = vmul.f32 %v32, %v36
    %v38 = vmul.f32 %v35, %v36
    %v39 = vsub.f32 %v27, %v37
    %v40 = vsub.f32 %v28, %v38
    %v41 = vmul.f32 %v39, %v39
    %v42 = vmul.f32 %v40, %v40
    %v43 = vsel %vm29, %v41, 0.0
    %44 = vadd.xlane.f32.xlu0 %v43
    %v45 = vpop.xlane.xlu0 %44
    %v46 = vsel %vm29, %v42, 0.0
    %47 = vadd.xlane.f32.xlu0 %v46
    %v48 = vpop.xlane.xlu0 %47
    %v49 = vmul.f32 %v45, %v36
    %v50 = vmul.f32 %v48, %v36
    %v51 = vadd.f32 %v49, 1e-06
    %v52 = vadd.f32 %v50, 1e-06
    %v53 = vrsqrt.pop %v51
    %v54 = vrsqrt.pop %v52
    %v55 = vmul.f32 %v39, %v53
    %v56 = vmul.f32 %v40, %v54
    %v57 = vld [vmem:[%s1] sm:$0x1]
    %v59 = vlaneseq
    %v60 = vshrl.u32 %v59, 7
    %v61 = vsub.s32 0, %v60
    %v62 = vrot.slane %v57, %v61
    %v64 = vmul.f32 %v55, %v62
    %v65 = vmul.f32 %v56, %v62
    %v66 = vld [vmem:[%s2] sm:$0x1]
    %v68 = vlaneseq
    %v69 = vshrl.u32 %v68, 7
    %v70 = vsub.s32 0, %v69
    %v71 = vrot.slane %v66, %v70
    %v73 = vadd.f32 %v64, %v71
    %v74 = vadd.f32 %v65, %v71
    %v75 = vpack.c.bf16 %v74, %v73
    %76 = vst.msk [vmem:[#allocation2] sm:$0xff] %vm29, %v75
  $region25: #{dinov2_forward.12} parent=0 // pred_fallthru
    _
  %v77 = vld [vmem:[#allocation2] sm:$0xff]
  %v78 = vld [vmem:[%s3] sm:$0xf]
  %v79 = vld [vmem:[%s3 + $0x4] sm:$0xf]
  %v80 = vld [vmem:[%s3 + $0x8] sm:$0xf]
  %v81 = vld [vmem:[%s3 + $0xc] sm:$0xf]
  %v82 = vld [vmem:[%s4] sm:$0x1]
  %v84 = vlaneseq
  %v85 = vshrl.u32 %v84, 7
  %v86 = vsub.s32 0, %v85
  %v87 = vrot.slane %v82, %v86
  %v93 = vunpack.c.l.b16 %v78
  %v94 = vunpack.c.l.b16 %v79
  %v95 = vunpack.c.l.b16 %v80
  %v96 = vunpack.c.l.b16 %v81
  %v97 = vpack.c.b16 %v94, %v93
  %v98 = vpack.c.b16 %v96, %v95
  %vm101 = vcmask 261120
  %v103 = vsel %vm101, %v77, 0
  %105 = vmatprep.subr.bf16.mxu0 0
  %106 = vmatpush1.bf16.msra.mxu0 %v97
  %107 = vmatprep.subr.bf16.mxu0 0
  %108 = vmatpush1.bf16.msra.mxu0 %v98
  %109 = vmatprep.subr.bf16.mxu0 0
  %110 = vmatpush1.bf16.msra.mxu0 0
  %111 = vmatprep.subr.bf16.mxu0 0
  %112 = vmatpush1.bf16.msra.mxu0 0
  %113 = vmatprep.subr.bf16.mxu0 0
  %114 = vmatpush1.bf16.msra.mxu0 0
  %115 = vmatprep.subr.bf16.mxu0 0
  %116 = vmatpush1.bf16.msra.mxu0 0
  %117 = vmatprep.subr.bf16.mxu0 0
  %118 = vmatpush1.bf16.msra.mxu0 0
  %119 = vmatprep.subr.bf16.mxu0 0
  %120 = vmatpush1.bf16.msra.mxu0 0
  %121 = vmatprep.subr.bf16.mxu0 0
  %122 = vmatpush1.bf16.msra.mxu0 0
  %123 = vmatprep.subr.bf16.mxu0 0
  %124 = vmatpush1.bf16.msra.mxu0 0
  %125 = vmatprep.subr.bf16.mxu0 0
  %126 = vmatpush1.bf16.msra.mxu0 0
  %127 = vmatprep.subr.bf16.mxu0 0
  %128 = vmatpush1.bf16.msra.mxu0 0
  %129 = vmatprep.subr.bf16.mxu0 0
  %130 = vmatpush1.bf16.msra.mxu0 0
  %131 = vmatprep.subr.bf16.mxu0 0
  %132 = vmatpush1.bf16.msra.mxu0 0
  %133 = vmatprep.subr.bf16.mxu0 0
  %134 = vmatpush1.bf16.msra.mxu0 0
  %135 = vmatprep.subr.bf16.mxu0 0
  %136 = vmatpush1.bf16.msra.mxu0 0
  %137 = vmatprep.mubr.bf16.mxu0 0
  %138 = vmatmul.mubr.bf16.gmra.mrb[0].mxu0 %v103
  %v139 = vpop.f32.mrb[0].mxu0
  %v140 = vadd.f32 %v87, %v139
  %v141 = vpop.f32.mrb[0].mxu0
  %v142 = vpop.f32.mrb[0].mxu0
  %v143 = vadd.f32 %v87, %v142
  %v144 = vpop.f32.mrb[0].mxu0
  %145 = vdwg.mxu0
  %v146 = vpack.c.bf16 %v143, %v140
  %v148 = vunpack.c.l.b16 %v146
  %v149 = vunpack.c.h.b16 %v146
  %v150 = vpack.c.b16 %v148, %v148
  %v151 = vpack.c.b16 %v149, %v149
  %vm154 = vcmask 781312
  %155 = vst.msk [vmem:[%s5] sm:$0xf] %vm154, %v150
  %156 = vst.msk [vmem:[%s5 + $0x4] sm:$0xf] %vm154, %v151
  // Predicated region
  $region26: #{dinov2_forward.12} parent=0 // pred_check
    _
  $region27: #{dinov2_forward.12} parent=0 // pred_check_branch
    %158 = sbr.rel (0) target = $region29
  $region28: #{dinov2_forward.12} parent=0 // pred_region
    _
  $region29: #{dinov2_forward.12} parent=0 // pred_fallthru
    _
  // Predicated region
  $region30: #{dinov2_forward.12} parent=0 // pred_check
    _
  $region31: #{dinov2_forward.12} parent=0 // pred_check_branch
    %160 = sbr.rel (0) target = $region33
  $region32: #{dinov2_forward.12} parent=0 // pred_region
    _
  $region33: #{dinov2_forward.12} parent=0 // pred_fallthru
    _

// kernel: dinov2_forward.13
$region0: #{dinov2_forward.13}
  #allocation0 [shape = 'u32[]', space=smem, size = 0x4, offset = 0x4, fixed_abs, tag = 'smem constant byte address 0x4 - core index']
  #allocation1 [shape = 'u32[144,128]{1,0:T(1,128)}', space=vmem, size = 0x12000, scoped, tag = 'internal scratch']
  %s0 = inlined_call_operand.vmem [shape: bf16[2,2,5,16], index: 0, kind: input, shape index: {}]
  %s1 = inlined_call_operand.vmem [shape: bf16[2,2,5,16], index: 1, kind: input, shape index: {}]
  %s2 = inlined_call_operand.vmem [shape: bf16[2,2,5,16], index: 2, kind: input, shape index: {}]
  %s3 = inlined_call_operand.vmem [shape: bf16[2,2,5,16], index: 3, kind: output, shape index: {}]
  %s4 = sld [smem:[#allocation0]]
  $region45: #{dinov2_forward.13} parent=0
    _
  %s6 = ssub.s32 1, %s4
  %s7 = scalar_select 0, %s6, %s4
  loop: start=0, step=1, limit=6
  $region2: #{dinov2_forward.13} parent=0 // loop_pre_header
    _
  $region3: #{dinov2_forward.13} parent=0 // loop_header
    %s9 = sphi 0, %s13
    %p10 = scmp.ge.s32.totalorder %s9, 6
    %s16 = sphi 0, %s28
    %s17 = sphi 0, %s24
    %s18 = sphi 0, %s16
    %s19 = sphi 0, %s17
    %s20 = sphi 0, %s18
    %s21 = sphi 0, %s19
    %s33 = sphi 0, %s35
    %s36 = sphi 0, %s33
    %s37 = sphi 0, %s36
    %s53 = sphi 0, %s37
    %s61 = sphi 0, %s63
    %s64 = sphi 0, %s61
    %s65 = sphi 0, %s64
    %s81 = sphi 0, %s65
    %s89 = sphi 0, %s91
    %s92 = sphi 0, %s89
    %s93 = sphi 0, %s92
    %s109 = sphi 0, %s93
    %s117 = sphi 0, %s119
    %s120 = sphi 0, %s117
    %s121 = sphi 0, %s120
    %s137 = sphi 0, %s121
  $region4: #{dinov2_forward.13} parent=0 // loop_header_branch
    %12 = sbr.rel (%p10) target = $region8
  $region5: #{dinov2_forward.13} parent=0 // loop_body
    %s14 = ssub.s32 %s9, 1
    %s15 = ssub.s32 %s9, 2
    %s22 = sadd.s32 1, %s17
    %p23 = scmp.ge.s32.totalorder %s22, 2
    %s24 = scalar_select %p23, 0, %s22
    %s25 = sadd.s32 1, %s16
    %s26 = scalar_select %p23, %s25, %s16
    %p27 = scmp.ge.s32.totalorder %s26, 2
    %s28 = scalar_select %p27, 0, %s26
    %s29 = ssub.s32 %s16, %s28
    %s30 = ssub.s32 %s17, %s24
    %s31 = sor.u32 %s29, %s30
    %p32 = scmp.eq.s32.totalorder %s31, 0
    %s34 = sadd.s32 %s33, 1
    %s35 = scalar_select %p32, %s33, %s34
    %p38 = pneg %p32
    %p39 = scmp.eq.s32.totalorder %s9, 3
    %p40 = por %p38, %p39
    %p41 = scmp.ne.s32.totalorder %s33, %s36
    %p42 = scmp.eq.s32.totalorder %s9, 0
    %p43 = por %p41, %p42
    %p44 = scmp.ne.s32.totalorder %s33, %s36
    %p45 = scmp.eq.s32.totalorder %s14, 3
    %p46 = por %p44, %p45
    %p47 = scmp.ne.s32.totalorder %s36, %s37
    %p48 = scmp.eq.s32.totalorder %s14, 0
    %p49 = por %p47, %p48
    %p50 = scmp.ne.s32.totalorder %s36, %s37
    %p51 = scmp.eq.s32.totalorder %s15, 3
    %p52 = por %p50, %p51
    %p54 = scmp.ne.s32.totalorder %s37, %s53
    %p55 = scmp.eq.s32.totalorder %s15, 0
    %p56 = por %p54, %p55
    %s57 = ssub.s32 %s16, %s28
    %s58 = ssub.s32 %s17, %s24
    %s59 = sor.u32 %s57, %s58
    %p60 = scmp.eq.s32.totalorder %s59, 0
    %s62 = sadd.s32 %s61, 1
    %s63 = scalar_select %p60, %s61, %s62
    %p66 = pneg %p60
    %p67 = scmp.eq.s32.totalorder %s9, 3
    %p68 = por %p66, %p67
    %p69 = scmp.ne.s32.totalorder %s61, %s64
    %p70 = scmp.eq.s32.totalorder %s9, 0
    %p71 = por %p69, %p70
    %p72 = scmp.ne.s32.totalorder %s61, %s64
    %p73 = scmp.eq.s32.totalorder %s14, 3
    %p74 = por %p72, %p73
    %p75 = scmp.ne.s32.totalorder %s64, %s65
    %p76 = scmp.eq.s32.totalorder %s14, 0
    %p77 = por %p75, %p76
    %p78 = scmp.ne.s32.totalorder %s64, %s65
    %p79 = scmp.eq.s32.totalorder %s15, 3
    %p80 = por %p78, %p79
    %p82 = scmp.ne.s32.totalorder %s65, %s81
    %p83 = scmp.eq.s32.totalorder %s15, 0
    %p84 = por %p82, %p83
    %s85 = ssub.s32 %s16, %s28
    %s86 = ssub.s32 %s17, %s24
    %s87 = sor.u32 %s85, %s86
    %p88 = scmp.eq.s32.totalorder %s87, 0
    %s90 = sadd.s32 %s89, 1
    %s91 = scalar_select %p88, %s89, %s90
    %p94 = pneg %p88
    %p95 = scmp.eq.s32.totalorder %s9, 3
    %p96 = por %p94, %p95
    %p97 = scmp.ne.s32.totalorder %s89, %s92
    %p98 = scmp.eq.s32.totalorder %s9, 0
    %p99 = por %p97, %p98
    %p100 = scmp.ne.s32.totalorder %s89, %s92
    %p101 = scmp.eq.s32.totalorder %s14, 3
    %p102 = por %p100, %p101
    %p103 = scmp.ne.s32.totalorder %s92, %s93
    %p104 = scmp.eq.s32.totalorder %s14, 0
    %p105 = por %p103, %p104
    %p106 = scmp.ne.s32.totalorder %s92, %s93
    %p107 = scmp.eq.s32.totalorder %s15, 3
    %p108 = por %p106, %p107
    %p110 = scmp.ne.s32.totalorder %s93, %s109
    %p111 = scmp.eq.s32.totalorder %s15, 0
    %p112 = por %p110, %p111
    %s113 = ssub.s32 %s16, %s28
    %s114 = ssub.s32 %s17, %s24
    %s115 = sor.u32 %s113, %s114
    %p116 = scmp.eq.s32.totalorder %s115, 0
    %s118 = sadd.s32 %s117, 1
    %s119 = scalar_select %p116, %s117, %s118
    %p122 = pneg %p116
    %p123 = scmp.eq.s32.totalorder %s9, 3
    %p124 = por %p122, %p123
    %p125 = scmp.ne.s32.totalorder %s117, %s120
    %p126 = scmp.eq.s32.totalorder %s9, 0
    %p127 = por %p125, %p126
    %p128 = scmp.ne.s32.totalorder %s117, %s120
    %p129 = scmp.eq.s32.totalorder %s14, 3
    %p130 = por %p128, %p129
    %p131 = scmp.ne.s32.totalorder %s120, %s121
    %p132 = scmp.eq.s32.totalorder %s14, 0
    %p133 = por %p131, %p132
    %p134 = scmp.ne.s32.totalorder %s120, %s121
    %p135 = scmp.eq.s32.totalorder %s15, 3
    %p136 = por %p134, %p135
    %p138 = scmp.ne.s32.totalorder %s121, %s137
    %p139 = scmp.eq.s32.totalorder %s15, 0
    %p140 = por %p138, %p139
    %p141 = scmp.le.s32.totalorder 1, %s9
    %p142 = scmp.lt.s32.totalorder %s9, 5
    %p143 = pnand %p141, %p142
    %p144 = pneg %p143
    // Predicated region
    $region9: #{dinov2_forward.13} parent=5 // pred_check
      _
    $region10: #{dinov2_forward.13} parent=5 // pred_check_branch
      %146 = sbr.rel (%p143) target = $region12
    $region11: #{dinov2_forward.13} parent=5 // pred_region
      %s147 = ssub.s32 %s9, 1
    $region12: #{dinov2_forward.13} parent=5 // pred_fallthru
      _
    %p148 = scmp.lt.s32.totalorder %s9, 4
    // Predicated region
    $region13: #{dinov2_forward.13} parent=5 // pred_check
      %p149 = pneg %p148
    $region14: #{dinov2_forward.13} parent=5 // pred_check_branch
      %151 = sbr.rel (%p149) target = $region16
    $region15: #{dinov2_forward.13} parent=5 // pred_region
      // Predicated region
      $region17: #{dinov2_forward.13} parent=15 // pred_check
        %p152 = pneg %p43
      $region18: #{dinov2_forward.13} parent=15 // pred_check_branch
        %154 = sbr.rel (%p152) target = $region20
      $region19: #{dinov2_forward.13} parent=15 // pred_region
        %p155 = scmp.lt.s32.totalorder %s16, 1
        %s156 = scalar_select %p155, %s16, 1
        %p157 = scmp.lt.s32.totalorder %s17, 1
        %s158 = scalar_select %p157, %s17, 1
        %s159 = smul.addr %s156, 2
        %s160 = sadd.s32 %s158, %s159
        %s161 = smul.addr %s160, 4
        %s162 = scalar_lea.vmem %s0, %s161
      $region20: #{dinov2_forward.13} parent=15 // pred_fallthru
        _
      // Predicated region
      $region21: #{dinov2_forward.13} parent=15 // pred_check
        %p163 = pneg %p71
      $region22: #{dinov2_forward.13} parent=15 // pred_check_branch
        %165 = sbr.rel (%p163) target = $region24
      $region23: #{dinov2_forward.13} parent=15 // pred_region
        %p166 = scmp.lt.s32.totalorder %s16, 1
        %s167 = scalar_select %p166, %s16, 1
        %p168 = scmp.lt.s32.totalorder %s17, 1
        %s169 = scalar_select %p168, %s17, 1
        %s170 = smul.addr %s167, 2
        %s171 = sadd.s32 %s169, %s170
        %s172 = smul.addr %s171, 4
        %s173 = scalar_lea.vmem %s1, %s172
      $region24: #{dinov2_forward.13} parent=15 // pred_fallthru
        _
      // Predicated region
      $region25: #{dinov2_forward.13} parent=15 // pred_check
        %p174 = pneg %p99
      $region26: #{dinov2_forward.13} parent=15 // pred_check_branch
        %176 = sbr.rel (%p174) target = $region28
      $region27: #{dinov2_forward.13} parent=15 // pred_region
        %p177 = scmp.lt.s32.totalorder %s16, 1
        %s178 = scalar_select %p177, %s16, 1
        %p179 = scmp.lt.s32.totalorder %s17, 1
        %s180 = scalar_select %p179, %s17, 1
        %s181 = smul.addr %s178, 2
        %s182 = sadd.s32 %s180, %s181
        %s183 = smul.addr %s182, 4
        %s184 = scalar_lea.vmem %s2, %s183
      $region28: #{dinov2_forward.13} parent=15 // pred_fallthru
        _
    $region16: #{dinov2_forward.13} parent=5 // pred_fallthru
      _
    %p185 = scmp.le.s32.totalorder 1, %s9
    %p186 = scmp.lt.s32.totalorder %s9, 5
    %p187 = pnand %p185, %p186
    %p188 = pneg %p187
    // Predicated region
    $region29: #{dinov2_forward.13} parent=5 // pred_check
      _
    $region30: #{dinov2_forward.13} parent=5 // pred_check_branch
      %190 = sbr.rel (%p187) target = $region32
    $region31: #{dinov2_forward.13} parent=5 // pred_region
      %s191 = ssub.s32 %s9, 1
      %p192 = scmp.lt.s32.totalorder %s18, 1
      %s193 = scalar_select %p192, %s18, 1
      %p194 = scmp.lt.s32.totalorder %s19, 1
      %s195 = scalar_select %p194, %s19, 1
      %s196 = smul.addr %s193, 2
      %s197 = sadd.s32 %s195, %s196
      %s198 = smul.addr %s197, 4
      %s199 = scalar_lea.vmem %s0, %s198
      %p200 = pneg %p49
      %p201 = pneg %p46
      %p202 = scmp.lt.s32.totalorder %s18, 1
      %s203 = scalar_select %p202, %s18, 1
      %p204 = scmp.lt.s32.totalorder %s19, 1
      %s205 = scalar_select %p204, %s19, 1
      %s206 = smul.addr %s203, 2
      %s207 = sadd.s32 %s205, %s206
      %s208 = smul.addr %s207, 4
      %s209 = scalar_lea.vmem %s1, %s208
      %p210 = pneg %p77
      %p211 = pneg %p74
      %p212 = scmp.lt.s32.totalorder %s18, 1
      %s213 = scalar_select %p212, %s18, 1
      %p214 = scmp.lt.s32.totalorder %s19, 1
      %s215 = scalar_select %p214, %s19, 1
      %s216 = smul.addr %s213, 2
      %s217 = sadd.s32 %s215, %s216
      %s218 = smul.addr %s217, 4
      %s219 = scalar_lea.vmem %s2, %s218
      %p220 = pneg %p105
      %p221 = pneg %p102
      %p222 = pneg %p133
      %p223 = pneg %p130
      %p224 = scmp.lt.s32.totalorder %s18, 1
      %s225 = scalar_select %p224, %s18, 1
      %p226 = scmp.lt.s32.totalorder %s19, 1
      %s227 = scalar_select %p226, %s19, 1
      %s228 = smul.addr %s225, 2
      %s229 = sadd.s32 %s227, %s228
      %s230 = smul.addr %s229, 4
      %s231 = scalar_lea.vmem %s3, %s230
      %p232 = scmp.lt.s32.totalorder %s18, 1
      %s233 = scalar_select %p232, %s18, 1
      %p234 = scmp.lt.s32.totalorder %s19, 1
      %s235 = scalar_select %p234, %s19, 1
      %s236 = smul.addr %s233, 2
      %s237 = sadd.s32 %s235, %s236
      %s238 = smul.addr %s237, 4
      %s239 = scalar_lea.vmem %s0, %s238
      %p240 = scmp.lt.s32.totalorder %s18, 1
      %s241 = scalar_select %p240, %s18, 1
      %p242 = scmp.lt.s32.totalorder %s19, 1
      %s243 = scalar_select %p242, %s19, 1
      %s244 = smul.addr %s241, 2
      %s245 = sadd.s32 %s243, %s244
      %s246 = smul.addr %s245, 4
      %s247 = scalar_lea.vmem %s1, %s246
      %p248 = scmp.lt.s32.totalorder %s18, 1
      %s249 = scalar_select %p248, %s18, 1
      %p250 = scmp.lt.s32.totalorder %s19, 1
      %s251 = scalar_select %p250, %s19, 1
      %s252 = smul.addr %s249, 2
      %s253 = sadd.s32 %s251, %s252
      %s254 = smul.addr %s253, 4
      %s255 = scalar_lea.vmem %s2, %s254
      %p256 = scmp.lt.s32.totalorder %s18, 1
      %s257 = scalar_select %p256, %s18, 1
      %p258 = scmp.lt.s32.totalorder %s19, 1
      %s259 = scalar_select %p258, %s19, 1
      %s260 = smul.addr %s257, 2
      %s261 = sadd.s32 %s259, %s260
      %s262 = smul.addr %s261, 4
      %s263 = scalar_lea.vmem %s3, %s262
      %v265 = vld [vmem:[%s239] sm:$0x7]
      %v266 = vunpack.c.l.bf16 %v265
      %v267 = vmul.f32 %v266, 0.25
      %v268 = vpack.c.bf16 %v267, %v267
      %v269 = vld [vmem:[%s247] sm:$0x7]
      %v270 = vld [vmem:[%s255] sm:$0x7]
      %vm271 = vcmask 130048
      %v273 = vsel %vm271, %v268, 0
      %v276 = vsel %vm271, %v269, 0
      %278 = vmatprep.subr.bf16.mxu0 0
      %279 = vmatpush1.bf16.xpose.msra.mxu0 %v276
      %280 = vmatprep.subr.bf16.mxu0 0
      %281 = vmatpush1.bf16.xpose.msra.mxu0 0
      %282 = vmatprep.subr.bf16.mxu0 0
      %283 = vmatpush1.bf16.xpose.msra.mxu0 0
      %284 = vmatprep.subr.bf16.mxu0 0
      %285 = vmatpush1.bf16.xpose.msra.mxu0 0
      %286 = vmatprep.subr.bf16.mxu0 0
      %287 = vmatpush1.bf16.xpose.msra.mxu0 0
      %288 = vmatprep.subr.bf16.mxu0 0
      %289 = vmatpush1.bf16.xpose.msra.mxu0 0
      %290 = vmatprep.subr.bf16.mxu0 0
      %291 = vmatpush1.bf16.xpose.msra.mxu0 0
      %292 = vmatprep.subr.bf16.mxu0 0
      %293 = vmatpush1.bf16.xpose.msra.mxu0 0
      %294 = vmatprep.subr.bf16.mxu0 0
      %295 = vmatpush1.bf16.xpose.msra.mxu0 0
      %296 = vmatprep.subr.bf16.mxu0 0
      %297 = vmatpush1.bf16.xpose.msra.mxu0 0
      %298 = vmatprep.subr.bf16.mxu0 0
      %299 = vmatpush1.bf16.xpose.msra.mxu0 0
      %300 = vmatprep.subr.bf16.mxu0 0
      %301 = vmatpush1.bf16.xpose.msra.mxu0 0
      %302 = vmatprep.subr.bf16.mxu0 0
      %303 = vmatpush1.bf16.xpose.msra.mxu0 0
      %304 = vmatprep.subr.bf16.mxu0 0
      %305 = vmatpush1.bf16.xpose.msra.mxu0 0
      %306 = vmatprep.subr.bf16.mxu0 0
      %307 = vmatpush1.bf16.xpose.msra.mxu0 0
      %308 = vmatprep.subr.bf16.mxu0 0
      %309 = vmatpush1.bf16.xpose.msra.mxu0 0
      %310 = vmatprep.mubr.bf16.mxu0 0
      %311 = vmatmul.mubr.bf16.gmra.mrb[0].mxu0 %v273
      %v312 = vpop.f32.mrb[0].mxu0
      %v313 = vadd.f32 0.0, %v312
      %v314 = vpop.f32.mrb[0].mxu0
      %v315 = vpop.f32.mrb[0].mxu0
      %v316 = vpop.f32.mrb[0].mxu0
      %317 = vdwg.mxu0
      %vm318 = vcmask 36864
      %v319 = vsel %vm318, %v313, -inf
      %320 = vmax.xlane.f32.xlu0 %v319
      %v321 = vpop.xlane.xlu0 %320
      %v322 = vsub.f32 %v313, %v321
      %v323 = vmul.f32 %v322, 1.442695
      %v324 = vpow.pop %v323
      %v325 = vsel %vm318, %v324, 0.0
      %326 = vadd.xlane.f32.xlu0 %v325
      %v327 = vpop.xlane.xlu0 %326
      %v328 = vrcp.pop %v327
      %v329 = vmul.f32 1.0, %v328
      %v330 = vmul.f32 %v324, %v329
      %v331 = vpack.c.bf16 %v330, %v330
      %vm332 = vcmask 39936
      %v334 = vsel %vm332, %v331, 0
      %vm336 = vcmask 1041408
      %vm337 = vcmask 1042432
      %v338 = vsel %vm336, 4294967295, 65535
      %v339 = vsel %vm337, %v338, 0
      %v341 = vand.u32 %v270, %v339
      %343 = vmatprep.subr.bf16.mxu0 0
      %344 = vmatpush1.bf16.msra.mxu0 %v341
      %345 = vmatprep.subr.bf16.mxu0 0
      %346 = vmatpush1.bf16.msra.mxu0 0
      %347 = vmatprep.subr.bf16.mxu0 0
      %348 = vmatpush1.bf16.msra.mxu0 0
      %349 = vmatprep.subr.bf16.mxu0 0
      %350 = vmatpush1.bf16.msra.mxu0 0
      %351 = vmatprep.subr.bf16.mxu0 0
      %352 = vmatpush1.bf16.msra.mxu0 0
      %353 = vmatprep.subr.bf16.mxu0 0
      %354 = vmatpush1.bf16.msra.mxu0 0
      %355 = vmatprep.subr.bf16.mxu0 0
      %356 = vmatpush1.bf16.msra.mxu0 0
      %357 = vmatprep.subr.bf16.mxu0 0
      %358 = vmatpush1.bf16.msra.mxu0 0
      %359 = vmatprep.subr.bf16.mxu0 0
      %360 = vmatpush1.bf16.msra.mxu0 0
      %361 = vmatprep.subr.bf16.mxu0 0
      %362 = vmatpush1.bf16.msra.mxu0 0
      %363 = vmatprep.subr.bf16.mxu0 0
      %364 = vmatpush1.bf16.msra.mxu0 0
      %365 = vmatprep.subr.bf16.mxu0 0
      %366 = vmatpush1.bf16.msra.mxu0 0
      %367 = vmatprep.subr.bf16.mxu0 0
      %368 = vmatpush1.bf16.msra.mxu0 0
      %369 = vmatprep.subr.bf16.mxu0 0
      %370 = vmatpush1.bf16.msra.mxu0 0
      %371 = vmatprep.subr.bf16.mxu0 0
      %372 = vmatpush1.bf16.msra.mxu0 0
      %373 = vmatprep.subr.bf16.mxu0 0
      %374 = vmatpush1.bf16.msra.mxu0 0
      %375 = vmatprep.mubr.bf16.mxu0 0
      %376 = vmatmul.mubr.bf16.gmra.mrb[0].mxu0 %v334
      %v377 = vpop.f32.mrb[0].mxu0
      %v378 = vadd.f32 0.0, %v377
      %v379 = vpop.f32.mrb[0].mxu0
      %v380 = vpop.f32.mrb[0].mxu0
      %v381 = vpop.f32.mrb[0].mxu0
      %382 = vdwg.mxu0
      %v383 = vpack.c.bf16 %v378, %v378
      %vm384 = vcmask 124928
      %vm385 = vsmask.f32 2304
      %vm386 = vmand %vm384, %vm385
      %v387 = vld [vmem:[%s263] sm:$0x7]
      %v388 = vsel %vm386, %v383, %v387
      %389 = vst [vmem:[%s263] sm:$0x7] %v388
      %p390 = scmp.lt.s32.totalorder %s18, 1
      %s391 = scalar_select %p390, %s18, 1
      %p392 = scmp.lt.s32.totalorder %s19, 1
      %s393 = scalar_select %p392, %s19, 1
      %s394 = smul.addr %s391, 2
      %s395 = sadd.s32 %s393, %s394
      %s396 = smul.addr %s395, 4
      %s397 = scalar_lea.vmem %s3, %s396
      // Predicated region
      $region33: #{dinov2_forward.13} parent=31 // pred_check
        %p398 = pneg %p130
      $region34: #{dinov2_forward.13} parent=31 // pred_check_branch
        %400 = sbr.rel (%p398) target = $region36
      $region35: #{dinov2_forward.13} parent=31 // pred_region
        _
      $region36: #{dinov2_forward.13} parent=31 // pred_fallthru
        _
    $region32: #{dinov2_forward.13} parent=5 // pred_fallthru
      _
    %p401 = scmp.le.s32.totalorder 2, %s9
    // Predicated region
    $region37: #{dinov2_forward.13} parent=5 // pred_check
      %p402 = pneg %p401
    $region38: #{dinov2_forward.13} parent=5 // pred_check_branch
      %404 = sbr.rel (%p402) target = $region40
    $region39: #{dinov2_forward.13} parent=5 // pred_region
      %s405 = ssub.s32 %s9, 2
      // Predicated region
      $region41: #{dinov2_forward.13} parent=39 // pred_check
        %p406 = pneg %p136
      $region42: #{dinov2_forward.13} parent=39 // pred_check_branch
        %408 = sbr.rel (%p406) target = $region44
      $region43: #{dinov2_forward.13} parent=39 // pred_region
        %p409 = scmp.lt.s32.totalorder %s20, 1
        %s410 = scalar_select %p409, %s20, 1
        %p411 = scmp.lt.s32.totalorder %s21, 1
        %s412 = scalar_select %p411, %s21, 1
        %s413 = smul.addr %s410, 2
        %s414 = sadd.s32 %s412, %s413
        %s415 = smul.addr %s414, 4
        %s416 = scalar_lea.vmem %s3, %s415
      $region44: #{dinov2_forward.13} parent=39 // pred_fallthru
        _
    $region40: #{dinov2_forward.13} parent=5 // pred_fallthru
      _
  $region6: #{dinov2_forward.13} parent=0 // loop_footer
    %s13 = sadd.s32 1, %s9
  $region7: #{dinov2_forward.13} parent=0 // loop_footer_branch
    %8 = sbr.rel target = $region3
  $region8: #{dinov2_forward.13} parent=0 // loop_exit
    _

// kernel: dinov2_forward.14
$region0: #{dinov2_forward.14}
  #allocation0 [shape = 'u32[]', space=smem, size = 0x4, offset = 0x4, fixed_abs, tag = 'smem constant byte address 0x4 - core index']
  #allocation1 [shape = 'u32[144,128]{1,0:T(1,128)}', space=vmem, size = 0x12000, scoped, tag = 'internal scratch']
  #allocation2 [shape = 'f32[16,32]{1,0:T(8,128)}', space=vmem, size = 0x2000, scoped, tag = 'scratch operand']
  %s0 = inlined_call_operand.vmem [shape: bf16[10,32], index: 0, kind: input, shape index: {}]
  %s1 = inlined_call_operand.vmem [shape: bf16[32,32], index: 1, kind: input, shape index: {}]
  %s2 = inlined_call_operand.vmem [shape: f32[1,32], index: 2, kind: input, shape index: {}]
  %s3 = inlined_call_operand.vmem [shape: bf16[10,32], index: 3, kind: input, shape index: {}]
  %s4 = inlined_call_operand.vmem [shape: f32[1,32], index: 4, kind: input, shape index: {}]
  %s5 = inlined_call_operand.vmem [shape: bf16[10,32], index: 5, kind: output, shape index: {}]
  %s6 = sld [smem:[#allocation0]]
  $region38: #{dinov2_forward.14} parent=0
    _
  %s8 = ssub.s32 1, %s6
  %s9 = scalar_select 0, %s8, %s6
  // Predicated region
  $region2: #{dinov2_forward.14} parent=0 // pred_check
    _
  $region3: #{dinov2_forward.14} parent=0 // pred_check_branch
    %11 = sbr.rel (0) target = $region5
  $region4: #{dinov2_forward.14} parent=0 // pred_region
    _
  $region5: #{dinov2_forward.14} parent=0 // pred_fallthru
    _
  // Predicated region
  $region6: #{dinov2_forward.14} parent=0 // pred_check
    _
  $region7: #{dinov2_forward.14} parent=0 // pred_check_branch
    %13 = sbr.rel (0) target = $region9
  $region8: #{dinov2_forward.14} parent=0 // pred_region
    _
  $region9: #{dinov2_forward.14} parent=0 // pred_fallthru
    _
  // Predicated region
  $region10: #{dinov2_forward.14} parent=0 // pred_check
    _
  $region11: #{dinov2_forward.14} parent=0 // pred_check_branch
    %15 = sbr.rel (0) target = $region13
  $region12: #{dinov2_forward.14} parent=0 // pred_region
    _
  $region13: #{dinov2_forward.14} parent=0 // pred_fallthru
    _
  // Predicated region
  $region14: #{dinov2_forward.14} parent=0 // pred_check
    _
  $region15: #{dinov2_forward.14} parent=0 // pred_check_branch
    %17 = sbr.rel (0) target = $region17
  $region16: #{dinov2_forward.14} parent=0 // pred_region
    _
  $region17: #{dinov2_forward.14} parent=0 // pred_fallthru
    _
  // Predicated region
  $region18: #{dinov2_forward.14} parent=0 // pred_check
    _
  $region19: #{dinov2_forward.14} parent=0 // pred_check_branch
    %19 = sbr.rel (0) target = $region21
  $region20: #{dinov2_forward.14} parent=0 // pred_region
    _
  $region21: #{dinov2_forward.14} parent=0 // pred_fallthru
    _
  %p21 = scmp.eq.s32.totalorder 0, 0
  // Predicated region
  $region22: #{dinov2_forward.14} parent=0 // pred_check
    %p22 = pneg %p21
  $region23: #{dinov2_forward.14} parent=0 // pred_check_branch
    %24 = sbr.rel (%p22) target = $region25
  $region24: #{dinov2_forward.14} parent=0 // pred_region
    %vm25 = vcmask 261120
    %26 = vst.msk [vmem:[#allocation2] sm:$0xff] %vm25, 0.0
    %27 = vst.msk [vmem:[#allocation2 + $0x8] sm:$0xff] %vm25, 0.0
  $region25: #{dinov2_forward.14} parent=0 // pred_fallthru
    _
  %v28 = vld [vmem:[#allocation2] sm:$0xff]
  %v29 = vld [vmem:[#allocation2 + $0x8] sm:$0xff]
  %v30 = vld [vmem:[%s0] sm:$0xf]
  %v31 = vld [vmem:[%s0 + $0x4] sm:$0xf]
  %v32 = vld [vmem:[%s1] sm:$0xf]
  %v33 = vld [vmem:[%s1 + $0x4] sm:$0xf]
  %v34 = vld [vmem:[%s1 + $0x8] sm:$0xf]
  %v35 = vld [vmem:[%s1 + $0xc] sm:$0xf]
  %v38 = vunpack.c.l.b16 %v30
  %v39 = vunpack.c.l.b16 %v31
  %v40 = vpack.c.b16 %v39, %v38
  %v45 = vunpack.c.l.b16 %v32
  %v46 = vunpack.c.l.b16 %v33
  %v47 = vunpack.c.l.b16 %v34
  %v48 = vunpack.c.l.b16 %v35
  %v49 = vpack.c.b16 %v46, %v45
  %v50 = vpack.c.b16 %v48, %v47
  %vm53 = vcmask 261120
  %v55 = vsel %vm53, %v40, 0
  %57 = vmatprep.subr.bf16.mxu0 0
  %58 = vmatpush1.bf16.msra.mxu0 %v49
  %59 = vmatprep.subr.bf16.mxu0 0
  %60 = vmatpush1.bf16.msra.mxu0 %v50
  %61 = vmatprep.subr.bf16.mxu0 0
  %62 = vmatpush1.bf16.msra.mxu0 0
  %63 = vmatprep.subr.bf16.mxu0 0
  %64 = vmatpush1.bf16.msra.mxu0 0
  %65 = vmatprep.subr.bf16.mxu0 0
  %66 = vmatpush1.bf16.msra.mxu0 0
  %67 = vmatprep.subr.bf16.mxu0 0
  %68 = vmatpush1.bf16.msra.mxu0 0
  %69 = vmatprep.subr.bf16.mxu0 0
  %70 = vmatpush1.bf16.msra.mxu0 0
  %71 = vmatprep.subr.bf16.mxu0 0
  %72 = vmatpush1.bf16.msra.mxu0 0
  %73 = vmatprep.subr.bf16.mxu0 0
  %74 = vmatpush1.bf16.msra.mxu0 0
  %75 = vmatprep.subr.bf16.mxu0 0
  %76 = vmatpush1.bf16.msra.mxu0 0
  %77 = vmatprep.subr.bf16.mxu0 0
  %78 = vmatpush1.bf16.msra.mxu0 0
  %79 = vmatprep.subr.bf16.mxu0 0
  %80 = vmatpush1.bf16.msra.mxu0 0
  %81 = vmatprep.subr.bf16.mxu0 0
  %82 = vmatpush1.bf16.msra.mxu0 0
  %83 = vmatprep.subr.bf16.mxu0 0
  %84 = vmatpush1.bf16.msra.mxu0 0
  %85 = vmatprep.subr.bf16.mxu0 0
  %86 = vmatpush1.bf16.msra.mxu0 0
  %87 = vmatprep.subr.bf16.mxu0 0
  %88 = vmatpush1.bf16.msra.mxu0 0
  %89 = vmatprep.mubr.bf16.mxu0 0
  %90 = vmatmul.mubr.bf16.gmra.mrb[0].mxu0 %v55
  %v91 = vpop.f32.mrb[0].mxu0
  %v92 = vadd.f32 0.0, %v91
  %v93 = vpop.f32.mrb[0].mxu0
  %v94 = vpop.f32.mrb[0].mxu0
  %v95 = vadd.f32 0.0, %v94
  %v96 = vpop.f32.mrb[0].mxu0
  %97 = vdwg.mxu0
  %v98 = vadd.f32 %v28, %v92
  %v99 = vadd.f32 %v29, %v95
  %100 = vst.msk [vmem:[#allocation2] sm:$0xff] %vm53, %v98
  %101 = vst.msk [vmem:[#allocation2 + $0x8] sm:$0xff] %vm53, %v99
  // Predicated region
  $region26: #{dinov2_forward.14} parent=0 // pred_check
    %p102 = pneg %p21
  $region27: #{dinov2_forward.14} parent=0 // pred_check_branch
    %104 = sbr.rel (%p102) target = $region29
  $region28: #{dinov2_forward.14} parent=0 // pred_region
    %v105 = vld [vmem:[#allocation2] sm:$0xff]
    %v106 = vld [vmem:[#allocation2 + $0x8] sm:$0xff]
    %v107 = vld [vmem:[%s2] sm:$0x1]
    %v109 = vlaneseq
    %v110 = vshrl.u32 %v109, 7
    %v111 = vsub.s32 0, %v110
    %v112 = vrot.slane %v107, %v111
    %v114 = vadd.f32 %v105, %v112
    %v115 = vadd.f32 %v106, %v112
    %v116 = vld [vmem:[%s4] sm:$0x1]
    %v118 = vlaneseq
    %v119 = vshrl.u32 %v118, 7
    %v120 = vsub.s32 0, %v119
    %v121 = vrot.slane %v116, %v120
    %v123 = vmul.f32 %v114, %v121
    %v124 = vmul.f32 %v115, %v121
    %v125 = vld [vmem:[%s3] sm:$0xf]
    %v126 = vld [vmem:[%s3 + $0x4] sm:$0xf]
    %v127 = vunpack.c.l.bf16 %v125
    %v128 = vunpack.c.l.bf16 %v126
    %v129 = vadd.f32 %v127, %v123
    %v130 = vadd.f32 %v128, %v124
    %v131 = vpack.c.bf16 %v130, %v129
    %v133 = vunpack.c.l.b16 %v131
    %v134 = vunpack.c.h.b16 %v131
    %v135 = vpack.c.b16 %v133, %v133
    %v136 = vpack.c.b16 %v134, %v134
    %vm139 = vcmask 257024
    %140 = vst.msk [vmem:[%s5] sm:$0xf] %vm139, %v135
    %141 = vst.msk [vmem:[%s5 + $0x4] sm:$0xf] %vm139, %v136
  $region29: #{dinov2_forward.14} parent=0 // pred_fallthru
    _
  // Predicated region
  $region30: #{dinov2_forward.14} parent=0 // pred_check
    _
  $region31: #{dinov2_forward.14} parent=0 // pred_check_branch
    %143 = sbr.rel (0) target = $region33
  $region32: #{dinov2_forward.14} parent=0 // pred_region
    _
  $region33: #{dinov2_forward.14} parent=0 // pred_fallthru
    _
  // Predicated region
  $region34: #{dinov2_forward.14} parent=0 // pred_check
    _
  $region35: #{dinov2_forward.14} parent=0 // pred_check_branch
    %145 = sbr.rel (0) target = $region37
  $region36: #{dinov2_forward.14} parent=0 // pred_region
    _
  $region37: #{dinov2_forward.14} parent=0 // pred_fallthru
    _

// kernel: dinov2_forward.15
$region0: #{dinov2_forward.15}
  #allocation0 [shape = 'u32[]', space=smem, size = 0x4, offset = 0x4, fixed_abs, tag = 'smem constant byte address 0x4 - core index']
  #allocation1 [shape = 'u32[144,128]{1,0:T(1,128)}', space=vmem, size = 0x12000, scoped, tag = 'internal scratch']
  #allocation2 [shape = 'bf16[16,32]{1,0:T(16,128)(2,1)}', space=vmem, size = 0x1000, scoped, tag = 'scratch operand']
  %s0 = inlined_call_operand.vmem [shape: bf16[10,32], index: 0, kind: input, shape index: {}]
  %s1 = inlined_call_operand.vmem [shape: f32[1,32], index: 1, kind: input, shape index: {}]
  %s2 = inlined_call_operand.vmem [shape: f32[1,32], index: 2, kind: input, shape index: {}]
  %s3 = inlined_call_operand.vmem [shape: bf16[32,128], index: 3, kind: input, shape index: {}]
  %s4 = inlined_call_operand.vmem [shape: f32[1,128], index: 4, kind: input, shape index: {}]
  %s5 = inlined_call_operand.vmem [shape: bf16[10,128], index: 5, kind: output, shape index: {}]
  %s6 = sld [smem:[#allocation0]]
  $region34: #{dinov2_forward.15} parent=0
    _
  %s8 = ssub.s32 1, %s6
  %s9 = scalar_select 0, %s8, %s6
  // Predicated region
  $region2: #{dinov2_forward.15} parent=0 // pred_check
    _
  $region3: #{dinov2_forward.15} parent=0 // pred_check_branch
    %11 = sbr.rel (0) target = $region5
  $region4: #{dinov2_forward.15} parent=0 // pred_region
    _
  $region5: #{dinov2_forward.15} parent=0 // pred_fallthru
    _
  // Predicated region
  $region6: #{dinov2_forward.15} parent=0 // pred_check
    _
  $region7: #{dinov2_forward.15} parent=0 // pred_check_branch
    %13 = sbr.rel (0) target = $region9
  $region8: #{dinov2_forward.15} parent=0 // pred_region
    _
  $region9: #{dinov2_forward.15} parent=0 // pred_fallthru
    _
  // Predicated region
  $region10: #{dinov2_forward.15} parent=0 // pred_check
    _
  $region11: #{dinov2_forward.15} parent=0 // pred_check_branch
    %15 = sbr.rel (0) target = $region13
  $region12: #{dinov2_forward.15} parent=0 // pred_region
    _
  $region13: #{dinov2_forward.15} parent=0 // pred_fallthru
    _
  // Predicated region
  $region14: #{dinov2_forward.15} parent=0 // pred_check
    _
  $region15: #{dinov2_forward.15} parent=0 // pred_check_branch
    %17 = sbr.rel (0) target = $region17
  $region16: #{dinov2_forward.15} parent=0 // pred_region
    _
  $region17: #{dinov2_forward.15} parent=0 // pred_fallthru
    _
  // Predicated region
  $region18: #{dinov2_forward.15} parent=0 // pred_check
    _
  $region19: #{dinov2_forward.15} parent=0 // pred_check_branch
    %19 = sbr.rel (0) target = $region21
  $region20: #{dinov2_forward.15} parent=0 // pred_region
    _
  $region21: #{dinov2_forward.15} parent=0 // pred_fallthru
    _
  %p21 = scmp.eq.s32.totalorder 0, 0
  // Predicated region
  $region22: #{dinov2_forward.15} parent=0 // pred_check
    %p22 = pneg %p21
  $region23: #{dinov2_forward.15} parent=0 // pred_check_branch
    %24 = sbr.rel (%p22) target = $region25
  $region24: #{dinov2_forward.15} parent=0 // pred_region
    %v25 = vld [vmem:[%s0] sm:$0xf]
    %v26 = vld [vmem:[%s0 + $0x4] sm:$0xf]
    %v27 = vunpack.c.l.bf16 %v25
    %v28 = vunpack.c.l.bf16 %v26
    %vm29 = vcmask 261120
    %v30 = vsel %vm29, %v27, 0.0
    %31 = vadd.xlane.f32.xlu0 %v30
    %v32 = vpop.xlane.xlu0 %31
    %v33 = vsel %vm29, %v28, 0.0
    %34 = vadd.xlane.f32.xlu0 %v33
    %v35 = vpop.xlane.xlu0 %34
    %v36 = vrcp.pop 32.0
    %v37 = vmul.f32 %v32, %v36
    %v38 = vmul.f32 %v35, %v36
    %v39 = vsub.f32 %v27, %v37
    %v40 = vsub.f32 %v28, %v38
    %v41 = vmul.f32 %v39, %v39
    %v42 = vmul.f32 %v40, %v40
    %v43 = vsel %vm29, %v41, 0.0
    %44 = vadd.xlane.f32.xlu0 %v43
    %v45 = vpop.xlane.xlu0 %44
    %v46 = vsel %vm29, %v42, 0.0
    %47 = vadd.xlane.f32.xlu0 %v46
    %v48 = vpop.xlane.xlu0 %47
    %v49 = vmul.f32 %v45, %v36
    %v50 = vmul.f32 %v48, %v36
    %v51 = vadd.f32 %v49, 1e-06
    %v52 = vadd.f32 %v50, 1e-06
    %v53 = vrsqrt.pop %v51
    %v54 = vrsqrt.pop %v52
    %v55 = vmul.f32 %v39, %v53
    %v56 = vmul.f32 %v40, %v54
    %v57 = vld [vmem:[%s1] sm:$0x1]
    %v59 = vlaneseq
    %v60 = vshrl.u32 %v59, 7
    %v61 = vsub.s32 0, %v60
    %v62 = vrot.slane %v57, %v61
    %v64 = vmul.f32 %v55, %v62
    %v65 = vmul.f32 %v56, %v62
    %v66 = vld [vmem:[%s2] sm:$0x1]
    %v68 = vlaneseq
    %v69 = vshrl.u32 %v68, 7
    %v70 = vsub.s32 0, %v69
    %v71 = vrot.slane %v66, %v70
    %v73 = vadd.f32 %v64, %v71
    %v74 = vadd.f32 %v65, %v71
    %v75 = vpack.c.bf16 %v74, %v73
    %76 = vst.msk [vmem:[#allocation2] sm:$0xff] %vm29, %v75
  $region25: #{dinov2_forward.15} parent=0 // pred_fallthru
    _
  %v77 = vld [vmem:[#allocation2] sm:$0xff]
  %v78 = vld [vmem:[%s3] sm:$0xf]
  %v79 = vld [vmem:[%s3 + $0x4] sm:$0xf]
  %v80 = vld [vmem:[%s3 + $0x8] sm:$0xf]
  %v81 = vld [vmem:[%s3 + $0xc] sm:$0xf]
  %v82 = vld [vmem:[%s4] sm:$0x1]
  %v84 = vlaneseq
  %v85 = vshrl.u32 %v84, 7
  %v86 = vsub.s32 0, %v85
  %v87 = vrot.slane %v82, %v86
  %v93 = vunpack.c.l.b16 %v78
  %v94 = vunpack.c.l.b16 %v79
  %v95 = vunpack.c.l.b16 %v80
  %v96 = vunpack.c.l.b16 %v81
  %v97 = vpack.c.b16 %v94, %v93
  %v98 = vpack.c.b16 %v96, %v95
  %vm101 = vcmask 261120
  %v103 = vsel %vm101, %v77, 0
  %105 = vmatprep.subr.bf16.mxu0 0
  %106 = vmatpush1.bf16.msra.mxu0 %v97
  %107 = vmatprep.subr.bf16.mxu0 0
  %108 = vmatpush1.bf16.msra.mxu0 %v98
  %109 = vmatprep.subr.bf16.mxu0 0
  %110 = vmatpush1.bf16.msra.mxu0 0
  %111 = vmatprep.subr.bf16.mxu0 0
  %112 = vmatpush1.bf16.msra.mxu0 0
  %113 = vmatprep.subr.bf16.mxu0 0
  %114 = vmatpush1.bf16.msra.mxu0 0
  %115 = vmatprep.subr.bf16.mxu0 0
  %116 = vmatpush1.bf16.msra.mxu0 0
  %117 = vmatprep.subr.bf16.mxu0 0
  %118 = vmatpush1.bf16.msra.mxu0 0
  %119 = vmatprep.subr.bf16.mxu0 0
  %120 = vmatpush1.bf16.msra.mxu0 0
  %121 = vmatprep.subr.bf16.mxu0 0
  %122 = vmatpush1.bf16.msra.mxu0 0
  %123 = vmatprep.subr.bf16.mxu0 0
  %124 = vmatpush1.bf16.msra.mxu0 0
  %125 = vmatprep.subr.bf16.mxu0 0
  %126 = vmatpush1.bf16.msra.mxu0 0
  %127 = vmatprep.subr.bf16.mxu0 0
  %128 = vmatpush1.bf16.msra.mxu0 0
  %129 = vmatprep.subr.bf16.mxu0 0
  %130 = vmatpush1.bf16.msra.mxu0 0
  %131 = vmatprep.subr.bf16.mxu0 0
  %132 = vmatpush1.bf16.msra.mxu0 0
  %133 = vmatprep.subr.bf16.mxu0 0
  %134 = vmatpush1.bf16.msra.mxu0 0
  %135 = vmatprep.subr.bf16.mxu0 0
  %136 = vmatpush1.bf16.msra.mxu0 0
  %137 = vmatprep.mubr.bf16.mxu0 0
  %138 = vmatmul.mubr.bf16.gmra.mrb[0].mxu0 %v103
  %v139 = vpop.f32.mrb[0].mxu0
  %v140 = vadd.f32 %v87, %v139
  %v141 = vpop.f32.mrb[0].mxu0
  %v142 = vpop.f32.mrb[0].mxu0
  %v143 = vadd.f32 %v87, %v142
  %v144 = vpop.f32.mrb[0].mxu0
  %145 = vdwg.mxu0
  %v146 = vmul.f32 %v140, %v140
  %v147 = vmul.f32 %v143, %v143
  %v148 = vmul.f32 %v140, %v146
  %v149 = vmul.f32 %v143, %v147
  %v150 = vmul.f32 %v148, 0.044715
  %v151 = vmul.f32 %v149, 0.044715
  %v152 = vadd.f32 %v140, %v150
  %v153 = vadd.f32 %v143, %v151
  %v154 = vmul.f32 %v152, 0.7978846
  %v155 = vmul.f32 %v153, 0.7978846
  %v156 = vtanh.pop %v154
  %v157 = vtanh.pop %v155
  %v158 = vadd.f32 %v156, 1.0
  %v159 = vadd.f32 %v157, 1.0
  %v160 = vmul.f32 %v158, 0.5
  %v161 = vmul.f32 %v159, 0.5
  %v162 = vmul.f32 %v140, %v160
  %v163 = vmul.f32 %v143, %v161
  %v164 = vpack.c.bf16 %v163, %v162
  %v166 = vunpack.c.l.b16 %v164
  %v167 = vunpack.c.h.b16 %v164
  %v168 = vpack.c.b16 %v166, %v166
  %v169 = vpack.c.b16 %v167, %v167
  %172 = vst [vmem:[%s5] sm:$0xf] %v168
  %173 = vst [vmem:[%s5 + $0x4] sm:$0xf] %v169
  // Predicated region
  $region26: #{dinov2_forward.15} parent=0 // pred_check
    _
  $region27: #{dinov2_forward.15} parent=0 // pred_check_branch
    %175 = sbr.rel (0) target = $region29
  $region28: #{dinov2_forward.15} parent=0 // pred_region
    _
  $region29: #{dinov2_forward.15} parent=0 // pred_fallthru
    _
  // Predicated region
  $region30: #{dinov2_forward.15} parent=0 // pred_check
    _
  $region31: #{dinov2_forward.15} parent=0 // pred_check_branch
    %177 = sbr.rel (0) target = $region33
  $region32: #{dinov2_forward.15} parent=0 // pred_region
    _
  $region33: #{dinov2_forward.15} parent=0 // pred_fallthru
    _

// kernel: dinov2_forward.16
$region0: #{dinov2_forward.16}
  #allocation0 [shape = 'u32[]', space=smem, size = 0x4, offset = 0x4, fixed_abs, tag = 'smem constant byte address 0x4 - core index']
  #allocation1 [shape = 'u32[144,128]{1,0:T(1,128)}', space=vmem, size = 0x12000, scoped, tag = 'internal scratch']
  #allocation2 [shape = 'f32[16,32]{1,0:T(8,128)}', space=vmem, size = 0x2000, scoped, tag = 'scratch operand']
  %s0 = inlined_call_operand.vmem [shape: bf16[10,128], index: 0, kind: input, shape index: {}]
  %s1 = inlined_call_operand.vmem [shape: bf16[128,32], index: 1, kind: input, shape index: {}]
  %s2 = inlined_call_operand.vmem [shape: f32[1,32], index: 2, kind: input, shape index: {}]
  %s3 = inlined_call_operand.vmem [shape: bf16[10,32], index: 3, kind: input, shape index: {}]
  %s4 = inlined_call_operand.vmem [shape: f32[1,32], index: 4, kind: input, shape index: {}]
  %s5 = inlined_call_operand.vmem [shape: bf16[10,32], index: 5, kind: output, shape index: {}]
  %s6 = sld [smem:[#allocation0]]
  $region38: #{dinov2_forward.16} parent=0
    _
  %s8 = ssub.s32 1, %s6
  %s9 = scalar_select 0, %s8, %s6
  // Predicated region
  $region2: #{dinov2_forward.16} parent=0 // pred_check
    _
  $region3: #{dinov2_forward.16} parent=0 // pred_check_branch
    %11 = sbr.rel (0) target = $region5
  $region4: #{dinov2_forward.16} parent=0 // pred_region
    _
  $region5: #{dinov2_forward.16} parent=0 // pred_fallthru
    _
  // Predicated region
  $region6: #{dinov2_forward.16} parent=0 // pred_check
    _
  $region7: #{dinov2_forward.16} parent=0 // pred_check_branch
    %13 = sbr.rel (0) target = $region9
  $region8: #{dinov2_forward.16} parent=0 // pred_region
    _
  $region9: #{dinov2_forward.16} parent=0 // pred_fallthru
    _
  // Predicated region
  $region10: #{dinov2_forward.16} parent=0 // pred_check
    _
  $region11: #{dinov2_forward.16} parent=0 // pred_check_branch
    %15 = sbr.rel (0) target = $region13
  $region12: #{dinov2_forward.16} parent=0 // pred_region
    _
  $region13: #{dinov2_forward.16} parent=0 // pred_fallthru
    _
  // Predicated region
  $region14: #{dinov2_forward.16} parent=0 // pred_check
    _
  $region15: #{dinov2_forward.16} parent=0 // pred_check_branch
    %17 = sbr.rel (0) target = $region17
  $region16: #{dinov2_forward.16} parent=0 // pred_region
    _
  $region17: #{dinov2_forward.16} parent=0 // pred_fallthru
    _
  // Predicated region
  $region18: #{dinov2_forward.16} parent=0 // pred_check
    _
  $region19: #{dinov2_forward.16} parent=0 // pred_check_branch
    %19 = sbr.rel (0) target = $region21
  $region20: #{dinov2_forward.16} parent=0 // pred_region
    _
  $region21: #{dinov2_forward.16} parent=0 // pred_fallthru
    _
  %p21 = scmp.eq.s32.totalorder 0, 0
  // Predicated region
  $region22: #{dinov2_forward.16} parent=0 // pred_check
    %p22 = pneg %p21
  $region23: #{dinov2_forward.16} parent=0 // pred_check_branch
    %24 = sbr.rel (%p22) target = $region25
  $region24: #{dinov2_forward.16} parent=0 // pred_region
    %vm25 = vcmask 261120
    %26 = vst.msk [vmem:[#allocation2] sm:$0xff] %vm25, 0.0
    %27 = vst.msk [vmem:[#allocation2 + $0x8] sm:$0xff] %vm25, 0.0
  $region25: #{dinov2_forward.16} parent=0 // pred_fallthru
    _
  %v28 = vld [vmem:[#allocation2] sm:$0xff]
  %v29 = vld [vmem:[#allocation2 + $0x8] sm:$0xff]
  %v30 = vld [vmem:[%s0] sm:$0xf]
  %v31 = vld [vmem:[%s0 + $0x4] sm:$0xf]
  %v32 = vld [vmem:[%s1] sm:$0xf]
  %v33 = vld [vmem:[%s1 + $0x4] sm:$0xf]
  %v34 = vld [vmem:[%s1 + $0x8] sm:$0xf]
  %v35 = vld [vmem:[%s1 + $0xc] sm:$0xf]
  %v36 = vld [vmem:[%s1 + $0x10] sm:$0xf]
  %v37 = vld [vmem:[%s1 + $0x14] sm:$0xf]
  %v38 = vld [vmem:[%s1 + $0x18] sm:$0xf]
  %v39 = vld [vmem:[%s1 + $0x1c] sm:$0xf]
  %v40 = vld [vmem:[%s1 + $0x20] sm:$0xf]
  %v41 = vld [vmem:[%s1 + $0x24] sm:$0xf]
  %v42 = vld [vmem:[%s1 + $0x28] sm:$0xf]
  %v43 = vld [vmem:[%s1 + $0x2c] sm:$0xf]
  %v44 = vld [vmem:[%s1 + $0x30] sm:$0xf]
  %v45 = vld [vmem:[%s1 + $0x34] sm:$0xf]
  %v46 = vld [vmem:[%s1 + $0x38] sm:$0xf]
  %v47 = vld [vmem:[%s1 + $0x3c] sm:$0xf]
  %v50 = vunpack.c.l.b16 %v30
  %v51 = vunpack.c.l.b16 %v31
  %v52 = vpack.c.b16 %v51, %v50
  %v70 = vunpack.c.l.b16 %v32
  %v71 = vunpack.c.l.b16 %v33
  %v72 = vunpack.c.l.b16 %v34
  %v73 = vunpack.c.l.b16 %v35
  %v74 = vunpack.c.l.b16 %v36
  %v75 = vunpack.c.l.b16 %v37
  %v76 = vunpack.c.l.b16 %v38
  %v77 = vunpack.c.l.b16 %v39
  %v78 = vunpack.c.l.b16 %v40
  %v79 = vunpack.c.l.b16 %v41
  %v80 = vunpack.c.l.b16 %v42
  %v81 = vunpack.c.l.b16 %v43
  %v82 = vunpack.c.l.b16 %v44
  %v83 = vunpack.c.l.b16 %v45
  %v84 = vunpack.c.l.b16 %v46
  %v85 = vunpack.c.l.b16 %v47
  %v86 = vpack.c.b16 %v71, %v70
  %v87 = vpack.c.b16 %v73, %v72
  %v88 = vpack.c.b16 %v75, %v74
  %v89 = vpack.c.b16 %v77, %v76
  %v90 = vpack.c.b16 %v79, %v78
  %v91 = vpack.c.b16 %v81, %v80
  %v92 = vpack.c.b16 %v83, %v82
  %v93 = vpack.c.b16 %v85, %v84
  %102 = vmatprep.subr.bf16.mxu0 0
  %103 = vmatpush1.bf16.msra.mxu0 %v86
  %104 = vmatprep.subr.bf16.mxu0 0
  %105 = vmatpush1.bf16.msra.mxu0 %v87
  %106 = vmatprep.subr.bf16.mxu0 0
  %107 = vmatpush1.bf16.msra.mxu0 %v88
  %108 = vmatprep.subr.bf16.mxu0 0
  %109 = vmatpush1.bf16.msra.mxu0 %v89
  %110 = vmatprep.subr.bf16.mxu0 0
  %111 = vmatpush1.bf16.msra.mxu0 %v90
  %112 = vmatprep.subr.bf16.mxu0 0
  %113 = vmatpush1.bf16.msra.mxu0 %v91
  %114 = vmatprep.subr.bf16.mxu0 0
  %115 = vmatpush1.bf16.msra.mxu0 %v92
  %116 = vmatprep.subr.bf16.mxu0 0
  %117 = vmatpush1.bf16.msra.mxu0 %v93
  %118 = vmatprep.subr.bf16.mxu0 0
  %119 = vmatpush1.bf16.msra.mxu0 0
  %120 = vmatprep.subr.bf16.mxu0 0
  %121 = vmatpush1.bf16.msra.mxu0 0
  %122 = vmatprep.subr.bf16.mxu0 0
  %123 = vmatpush1.bf16.msra.mxu0 0
  %124 = vmatprep.subr.bf16.mxu0 0
  %125 = vmatpush1.bf16.msra.mxu0 0
  %126 = vmatprep.subr.bf16.mxu0 0
  %127 = vmatpush1.bf16.msra.mxu0 0
  %128 = vmatprep.subr.bf16.mxu0 0
  %129 = vmatpush1.bf16.msra.mxu0 0
  %130 = vmatprep.subr.bf16.mxu0 0
  %131 = vmatpush1.bf16.msra.mxu0 0
  %132 = vmatprep.subr.bf16.mxu0 0
  %133 = vmatpush1.bf16.msra.mxu0 0
  %134 = vmatprep.mubr.bf16.mxu0 0
  %135 = vmatmul.mubr.bf16.gmra.mrb[0].mxu0 %v52
  %v136 = vpop.f32.mrb[0].mxu0
  %v137 = vadd.f32 0.0, %v136
  %v138 = vpop.f32.mrb[0].mxu0
  %v139 = vpop.f32.mrb[0].mxu0
  %v140 = vadd.f32 0.0, %v139
  %v141 = vpop.f32.mrb[0].mxu0
  %142 = vdwg.mxu0
  %v143 = vadd.f32 %v28, %v137
  %v144 = vadd.f32 %v29, %v140
  %vm145 = vcmask 261120
  %146 = vst.msk [vmem:[#allocation2] sm:$0xff] %vm145, %v143
  %147 = vst.msk [vmem:[#allocation2 + $0x8] sm:$0xff] %vm145, %v144
  // Predicated region
  $region26: #{dinov2_forward.16} parent=0 // pred_check
    %p148 = pneg %p21
  $region27: #{dinov2_forward.16} parent=0 // pred_check_branch
    %150 = sbr.rel (%p148) target = $region29
  $region28: #{dinov2_forward.16} parent=0 // pred_region
    %v151 = vld [vmem:[#allocation2] sm:$0xff]
    %v152 = vld [vmem:[#allocation2 + $0x8] sm:$0xff]
    %v153 = vld [vmem:[%s2] sm:$0x1]
    %v155 = vlaneseq
    %v156 = vshrl.u32 %v155, 7
    %v157 = vsub.s32 0, %v156
    %v158 = vrot.slane %v153, %v157
    %v160 = vadd.f32 %v151, %v158
    %v161 = vadd.f32 %v152, %v158
    %v162 = vld [vmem:[%s4] sm:$0x1]
    %v164 = vlaneseq
    %v165 = vshrl.u32 %v164, 7
    %v166 = vsub.s32 0, %v165
    %v167 = vrot.slane %v162, %v166
    %v169 = vmul.f32 %v160, %v167
    %v170 = vmul.f32 %v161, %v167
    %v171 = vld [vmem:[%s3] sm:$0xf]
    %v172 = vld [vmem:[%s3 + $0x4] sm:$0xf]
    %v173 = vunpack.c.l.bf16 %v171
    %v174 = vunpack.c.l.bf16 %v172
    %v175 = vadd.f32 %v173, %v169
    %v176 = vadd.f32 %v174, %v170
    %v177 = vpack.c.bf16 %v176, %v175
    %v179 = vunpack.c.l.b16 %v177
    %v180 = vunpack.c.h.b16 %v177
    %v181 = vpack.c.b16 %v179, %v179
    %v182 = vpack.c.b16 %v180, %v180
    %vm185 = vcmask 257024
    %186 = vst.msk [vmem:[%s5] sm:$0xf] %vm185, %v181
    %187 = vst.msk [vmem:[%s5 + $0x4] sm:$0xf] %vm185, %v182
  $region29: #{dinov2_forward.16} parent=0 // pred_fallthru
    _
  // Predicated region
  $region30: #{dinov2_forward.16} parent=0 // pred_check
    _
  $region31: #{dinov2_forward.16} parent=0 // pred_check_branch
    %189 = sbr.rel (0) target = $region33
  $region32: #{dinov2_forward.16} parent=0 // pred_region
    _
  $region33: #{dinov2_forward.16} parent=0 // pred_fallthru
    _
  // Predicated region
  $region34: #{dinov2_forward.16} parent=0 // pred_check
    _
  $region35: #{dinov2_forward.16} parent=0 // pred_check_branch
    %191 = sbr.rel (0) target = $region37
  $region36: #{dinov2_forward.16} parent=0 // pred_region
    _
  $region37: #{dinov2_forward.16} parent=0 // pred_fallthru
    _

</llo_original>
